<compile_context>
chip_gen: v7x
topology: tpu7x:2x2x1
jax: 0.10.0
libtpu: 0.0.40
codegen_flags: <defaults>
</compile_context>

<pallas_src>
import functools

import jax
import jax.numpy as jnp
from jax import lax
from jax.experimental import pallas as pl
from jax.experimental.pallas import tpu as pltpu


# dot_general dimension numbers: contract dim 1 of both operands (A @ B^T) and
# the standard A @ B form.
_NT = (((1,), (1,)), ((), ()))
_NN = (((1,), (0,)), ((), ()))


# ---------------------------------------------------------------------------
# Fused MHA kernel
# ---------------------------------------------------------------------------
def _mha_fused_kernel(x_ref, wk_ref, bk_ref, wqv_ref, bqv_ref, wz_ref, bz_ref,
                      o_ref, *scratch, N, E, H, D):
    if N == D:
        yk_s, yqv_s, k_s, z_s = scratch
        q_s = v_s = None
    else:
        yk_s, yqv_s, k_s, q_s, v_s, z_s = scratch

    f32 = jnp.float32
    x = x_ref[...]                                            # (N, E)

    # ---- fused projections (one MXU pass for K, one for Q+V) --------------
    # yk[n, c]   = x[n] . wk[c]  + bk[c]      -> natural (N, E) layout
    yk = lax.dot_general(x, wk_ref[...], _NT, preferred_element_type=f32)
    yk_s[...] = yk + bk_ref[...]
    # yqvT[c, n] = wqv[c] . x[n] + bqv[c]     -> transposed (2E, N) layout
    #   rows [0, E)  == WQ(inp)[0]  (i.e. yq.T),  rows [E, 2E) == WV(inp)[0]
    yqvT = lax.dot_general(wqv_ref[...], x, _NT, preferred_element_type=f32)
    yqv_s[...] = yqvT + bqv_ref[...]

    # ---- reproduce the reference's reshape scrambles as static row copies -
    # dst[h*N + i, :] = row-major-flat(src matrix)[D*(h*N + i) : ... + D]
    def scatter_heads(src, src_ncols, src_row_off, dst):
        for h in range(H):
            for i in range(N):
                f = D * (h * N + i)
                done = 0
                while done < D:
                    r, c = f // src_ncols, f % src_ncols
                    take = min(D - done, src_ncols - c)
                    dst[h * N + i:h * N + i + 1, done:done + take] = (
                        src[src_row_off + r:src_row_off + r + 1, c:c + take])
                    f += take
                    done += take

    # K = WK(inp).T.reshape(H, N, D): flat over yk as an (N, E) matrix
    scatter_heads(yk_s, E, 0, k_s)
    if N != D:
        # Q = WQ(inp).reshape(H, N, D): flat over yq.T, an (E, N) matrix
        scatter_heads(yqv_s, N, 0, q_s)
        scatter_heads(yqv_s, N, E, v_s)

    # ---- per-head attention (unrolled; all operands resident in VMEM) -----
    inv_scale = 1.0 / float(D)        # reference divides by len_head, not sqrt
    for h in range(H):
        k_h = k_s[h * N:(h + 1) * N, :]                       # (N, D)
        if N == D:
            # when N == D the scrambled Q/V rows are exactly contiguous rows
            # of the transposed projections
            q_h = yqv_s[h * D:(h + 1) * D, :]                 # (N, D)
            v_h = yqv_s[E + h * D:E + (h + 1) * D, :]         # (N, D)
        else:
            q_h = q_s[h * N:(h + 1) * N, :]
            v_h = v_s[h * N:(h + 1) * N, :]

        s = lax.dot_general(q_h, k_h, _NT,
                            preferred_element_type=f32) * inv_scale
        s_max = jnp.max(s, axis=-1, keepdims=True)
        p = jnp.exp(s - s_max)
        denom = jnp.sum(p, axis=-1, keepdims=True)
        p = p * pl.reciprocal(denom, approx=False)
        # Z.moveaxis(1,2).flatten(0,1).T == heads concatenated along lanes
        z_s[:, h * D:(h + 1) * D] = lax.dot_general(
            p, v_h, _NN, preferred_element_type=f32)

    # ---- output projection: out = Zcat @ wz^T + bz -------------------------
    o_ref[...] = (lax.dot_general(z_s[...], wz_ref[...], _NT,
                                  preferred_element_type=f32) + bz_ref[...])


# ---------------------------------------------------------------------------
# Wrapper: one pallas_call for the whole forward pass
# ---------------------------------------------------------------------------
@functools.partial(jax.jit, static_argnums=2)
def mha_forward(x, params, num_heads):
    """x: (1, N, E) float32 -> (1, N, E) float32 (single fused Pallas call)."""
    _, n, e = x.shape
    assert e % num_heads == 0
    d = e // num_heads
    x2 = x[0]

    # Weights stay in torch (Cout, Cin) layout (kernel contracts on Cin of
    # both operands).  Q and V weights/biases are stacked once so Q+V come
    # out of a single MXU pass.
    wk = params["wk"]
    wz = params["wz"]
    w_qv = jnp.concatenate([params["wq"], params["wv"]], axis=0)    # (2E, E)
    b_qv = jnp.concatenate([params["bq"], params["bv"]]).reshape(2 * e, 1)
    bk = params["bk"].reshape(1, e)
    bz = params["bz"].reshape(1, e)

    scratch = [
        pltpu.VMEM((n, e), jnp.float32),               # yk_s  (K projection)
        pltpu.VMEM((2 * e, n), jnp.float32),           # yqv_s (Q,V transposed)
        pltpu.VMEM((num_heads * n, d), jnp.float32),   # k_s   (scrambled K rows)
    ]
    if n != d:
        scratch += [pltpu.VMEM((num_heads * n, d), jnp.float32),   # q_s
                    pltpu.VMEM((num_heads * n, d), jnp.float32)]   # v_s
    scratch += [pltpu.VMEM((n, e), jnp.float32)]       # z_s (heads along lanes)

    flops = (2 * n * e * e                 # K projection
             + 2 * (2 * e) * e * n         # fused Q+V projection
             + num_heads * 4 * n * n * d   # scores + P@V
             + 2 * n * e * e)              # output projection
    bytes_accessed = 4 * (2 * n * e + 4 * e * e + 4 * e)

    kernel = functools.partial(_mha_fused_kernel, N=n, E=e, H=num_heads, D=d)
    # TODO(synk): for much larger N/E, add a grid over N and re-derive tile
    # sizes against v7x's 64 MiB VMEM; at these shapes everything fits.
    out = pl.pallas_call(
        kernel,
        out_shape=jax.ShapeDtypeStruct((n, e), jnp.float32),
        in_specs=[
            pl.BlockSpec((n, e), lambda: (0, 0)),          # x2
            pl.BlockSpec((e, e), lambda: (0, 0)),          # wk
            pl.BlockSpec((1, e), lambda: (0, 0)),          # bk
            pl.BlockSpec((2 * e, e), lambda: (0, 0)),      # w_qv
            pl.BlockSpec((2 * e, 1), lambda: (0, 0)),      # b_qv
            pl.BlockSpec((e, e), lambda: (0, 0)),          # wz
            pl.BlockSpec((1, e), lambda: (0, 0)),          # bz
        ],
        out_specs=pl.BlockSpec((n, e), lambda: (0, 0)),
        scratch_shapes=scratch,
        cost_estimate=pl.CostEstimate(
            flops=flops,
            transcendentals=num_heads * n * n,
            bytes_accessed=bytes_accessed),
    )(x2, wk, bk, w_qv, b_qv, wz, bz)
    return out[None]                                       # (1, N, E)


# ---------------------------------------------------------------------------
# Pure-jnp reference (same math, no Pallas) for the correctness check
# ---------------------------------------------------------------------------
def mha_forward_ref(x, params, num_heads):
    _, n, e = x.shape
    d = e // num_heads
    x2 = x[0]
    yk = x2 @ params["wk"].T + params["bk"]
    yq = x2 @ params["wq"].T + params["bq"]
    yv = x2 @ params["wv"].T + params["bv"]
    K = yk.reshape(num_heads, n, d)
    Q = yq.T.reshape(num_heads, n, d)
    V = yv.T.reshape(num_heads, n, d)
    s = jnp.einsum("hqd,hkd->hqk", Q, K) / d
    p = jax.nn.softmax(s, axis=2)
    Z = jnp.einsum("hqk,hkd->hqd", p, V)
    z_flat = jnp.moveaxis(Z, 1, 2).reshape(e, n)
    out = z_flat.T @ params["wz"].T + params["bz"]
    return out[None]


# ---------------------------------------------------------------------------
if __name__ == "__main__":
    # small shapes consistent with the module (len_embedding % num_heads == 0)
    NUM_EMBEDDINGS = 16   # sequence length N
    LEN_EMBEDDING = 64    # E
    NUM_HEADS = 4         # H  (len_head D = 16)

    key = jax.random.PRNGKey(0)
    k_wk, k_bk, k_wq, k_bq, k_wv, k_bv, k_wz, k_bz, k_x = jax.random.split(key, 9)
    E = LEN_EMBEDDING
    scale = 1.0 / jnp.sqrt(jnp.float32(E))
    params = {
        "wk": scale * jax.random.normal(k_wk, (E, E), jnp.float32),
        "bk": scale * jax.random.normal(k_bk, (E,), jnp.float32),
        "wq": scale * jax.random.normal(k_wq, (E, E), jnp.float32),
        "bq": scale * jax.random.normal(k_bq, (E,), jnp.float32),
        "wv": scale * jax.random.normal(k_wv, (E, E), jnp.float32),
        "bv": scale * jax.random.normal(k_bv, (E,), jnp.float32),
        "wz": scale * jax.random.normal(k_wz, (E, E), jnp.float32),
        "bz": scale * jax.random.normal(k_bz, (E,), jnp.float32),
    }

    x = jax.random.normal(k_x, (1, NUM_EMBEDDINGS, LEN_EMBEDDING), jnp.float32)

    out = mha_forward(x, params, NUM_HEADS)
    out = jax.block_until_ready(out)

    ref = mha_forward_ref(x, params, NUM_HEADS)
    assert out.shape == (1, NUM_EMBEDDINGS, LEN_EMBEDDING)
    assert jnp.allclose(out, ref, atol=1e-4, rtol=1e-4), "Pallas output mismatch"

    print("KERNEL_OK")
</pallas_src>

<mosaic_0001>
module attributes {stable_mosaic.version = 11 : i64} {
  func.func @_mha_fused_kernel(%arg0: memref<16x64xf32, #tpu.memory_space<vmem>>, %arg1: memref<64x64xf32, #tpu.memory_space<vmem>>, %arg2: memref<1x64xf32, #tpu.memory_space<vmem>>, %arg3: memref<128x64xf32, #tpu.memory_space<vmem>>, %arg4: memref<128x1xf32, #tpu.memory_space<vmem>>, %arg5: memref<64x64xf32, #tpu.memory_space<vmem>>, %arg6: memref<1x64xf32, #tpu.memory_space<vmem>>, %arg7: memref<16x64xf32, #tpu.memory_space<vmem>>, %arg8: memref<16x64xf32, #tpu.memory_space<vmem>>, %arg9: memref<128x16xf32, #tpu.memory_space<vmem>>, %arg10: memref<64x16xf32, #tpu.memory_space<vmem>>, %arg11: memref<16x64xf32, #tpu.memory_space<vmem>>) attributes {dimension_semantics = [], scalar_prefetch = 0 : i64, scratch_operands = 4 : i64, tpu.core_type = #tpu.core_type<tc>} {
    %c0 = arith.constant 0 : index
    %c0_0 = arith.constant 0 : index
    %0 = vector.load %arg0[%c0, %c0_0] : memref<16x64xf32, #tpu.memory_space<vmem>>, vector<16x64xf32>
    %c0_1 = arith.constant 0 : index
    %c0_2 = arith.constant 0 : index
    %1 = vector.load %arg1[%c0_1, %c0_2] : memref<64x64xf32, #tpu.memory_space<vmem>>, vector<64x64xf32>
    %cst = arith.constant dense<0.000000e+00> : vector<16x64xf32>
    %2 = tpu.matmul %0, %1, %cst {dimension_numbers = #tpu.dot_dimension_numbers<[1], [1], [0], [0], [0, 0, 1, 0], [], []>} : vector<16x64xf32>, vector<64x64xf32>, vector<16x64xf32> -> vector<16x64xf32>
    %c0_3 = arith.constant 0 : index
    %c0_4 = arith.constant 0 : index
    %3 = vector.load %arg2[%c0_3, %c0_4] : memref<1x64xf32, #tpu.memory_space<vmem>>, vector<1x64xf32>
    %4 = vector.broadcast %3 : vector<1x64xf32> to vector<16x64xf32>
    %5 = arith.addf %2, %4 : vector<16x64xf32>
    %c0_5 = arith.constant 0 : index
    %c0_6 = arith.constant 0 : index
    %6 = vector.load %arg8[%c0_5, %c0_6] : memref<16x64xf32, #tpu.memory_space<vmem>>, vector<16x64xf32>
    tpu.vector_store %arg8[%c0_5, %c0_6], %5 {strides = array<i32>} : memref<16x64xf32, #tpu.memory_space<vmem>>, vector<16x64xf32>,
    %c0_7 = arith.constant 0 : index
    %c0_8 = arith.constant 0 : index
    %7 = vector.load %arg3[%c0_7, %c0_8] : memref<128x64xf32, #tpu.memory_space<vmem>>, vector<128x64xf32>
    %cst_9 = arith.constant dense<0.000000e+00> : vector<128x16xf32>
    %8 = tpu.matmul %7, %0, %cst_9 {dimension_numbers = #tpu.dot_dimension_numbers<[1], [1], [0], [0], [0, 0, 1, 0], [], []>} : vector<128x64xf32>, vector<16x64xf32>, vector<128x16xf32> -> vector<128x16xf32>
    %c0_10 = arith.constant 0 : index
    %c0_11 = arith.constant 0 : index
    %9 = vector.load %arg4[%c0_10, %c0_11] : memref<128x1xf32, #tpu.memory_space<vmem>>, vector<128x1xf32>
    %10 = vector.broadcast %9 : vector<128x1xf32> to vector<128x16xf32>
    %11 = arith.addf %8, %10 : vector<128x16xf32>
    %c0_12 = arith.constant 0 : index
    %c0_13 = arith.constant 0 : index
    %12 = vector.load %arg9[%c0_12, %c0_13] : memref<128x16xf32, #tpu.memory_space<vmem>>, vector<128x16xf32>
    tpu.vector_store %arg9[%c0_12, %c0_13], %11 {strides = array<i32>} : memref<128x16xf32, #tpu.memory_space<vmem>>, vector<128x16xf32>,
    %c0_14 = arith.constant 0 : index
    %c0_15 = arith.constant 0 : index
    %13 = vector.load %arg8[%c0_14, %c0_15] : memref<16x64xf32, #tpu.memory_space<vmem>>, vector<1x16xf32>
    %c0_16 = arith.constant 0 : index
    %c0_17 = arith.constant 0 : index
    %14 = vector.load %arg10[%c0_16, %c0_17] : memref<64x16xf32, #tpu.memory_space<vmem>>, vector<1x16xf32>
    tpu.vector_store %arg10[%c0_16, %c0_17], %13 {strides = array<i32>} : memref<64x16xf32, #tpu.memory_space<vmem>>, vector<1x16xf32>,
    %c0_18 = arith.constant 0 : index
    %c16 = arith.constant 16 : index
    %15 = vector.load %arg8[%c0_18, %c16] : memref<16x64xf32, #tpu.memory_space<vmem>>, vector<1x16xf32>
    %c1 = arith.constant 1 : index
    %c0_19 = arith.constant 0 : index
    %16 = vector.load %arg10[%c1, %c0_19] : memref<64x16xf32, #tpu.memory_space<vmem>>, vector<1x16xf32>
    tpu.vector_store %arg10[%c1, %c0_19], %15 {strides = array<i32>} : memref<64x16xf32, #tpu.memory_space<vmem>>, vector<1x16xf32>,
    %c0_20 = arith.constant 0 : index
    %c32 = arith.constant 32 : index
    %17 = vector.load %arg8[%c0_20, %c32] : memref<16x64xf32, #tpu.memory_space<vmem>>, vector<1x16xf32>
    %c2 = arith.constant 2 : index
    %c0_21 = arith.constant 0 : index
    %18 = vector.load %arg10[%c2, %c0_21] : memref<64x16xf32, #tpu.memory_space<vmem>>, vector<1x16xf32>
    tpu.vector_store %arg10[%c2, %c0_21], %17 {strides = array<i32>} : memref<64x16xf32, #tpu.memory_space<vmem>>, vector<1x16xf32>,
    %c0_22 = arith.constant 0 : index
    %c48 = arith.constant 48 : index
    %19 = vector.load %arg8[%c0_22, %c48] : memref<16x64xf32, #tpu.memory_space<vmem>>, vector<1x16xf32>
    %c3 = arith.constant 3 : index
    %c0_23 = arith.constant 0 : index
    %20 = vector.load %arg10[%c3, %c0_23] : memref<64x16xf32, #tpu.memory_space<vmem>>, vector<1x16xf32>
    tpu.vector_store %arg10[%c3, %c0_23], %19 {strides = array<i32>} : memref<64x16xf32, #tpu.memory_space<vmem>>, vector<1x16xf32>,
    %c1_24 = arith.constant 1 : index
    %c0_25 = arith.constant 0 : index
    %21 = vector.load %arg8[%c1_24, %c0_25] : memref<16x64xf32, #tpu.memory_space<vmem>>, vector<1x16xf32>
    %c4 = arith.constant 4 : index
    %c0_26 = arith.constant 0 : index
    %22 = vector.load %arg10[%c4, %c0_26] : memref<64x16xf32, #tpu.memory_space<vmem>>, vector<1x16xf32>
    tpu.vector_store %arg10[%c4, %c0_26], %21 {strides = array<i32>} : memref<64x16xf32, #tpu.memory_space<vmem>>, vector<1x16xf32>,
    %c1_27 = arith.constant 1 : index
    %c16_28 = arith.constant 16 : index
    %23 = vector.load %arg8[%c1_27, %c16_28] : memref<16x64xf32, #tpu.memory_space<vmem>>, vector<1x16xf32>
    %c5 = arith.constant 5 : index
    %c0_29 = arith.constant 0 : index
    %24 = vector.load %arg10[%c5, %c0_29] : memref<64x16xf32, #tpu.memory_space<vmem>>, vector<1x16xf32>
    tpu.vector_store %arg10[%c5, %c0_29], %23 {strides = array<i32>} : memref<64x16xf32, #tpu.memory_space<vmem>>, vector<1x16xf32>,
    %c1_30 = arith.constant 1 : index
    %c32_31 = arith.constant 32 : index
    %25 = vector.load %arg8[%c1_30, %c32_31] : memref<16x64xf32, #tpu.memory_space<vmem>>, vector<1x16xf32>
    %c6 = arith.constant 6 : index
    %c0_32 = arith.constant 0 : index
    %26 = vector.load %arg10[%c6, %c0_32] : memref<64x16xf32, #tpu.memory_space<vmem>>, vector<1x16xf32>
    tpu.vector_store %arg10[%c6, %c0_32], %25 {strides = array<i32>} : memref<64x16xf32, #tpu.memory_space<vmem>>, vector<1x16xf32>,
    %c1_33 = arith.constant 1 : index
    %c48_34 = arith.constant 48 : index
    %27 = vector.load %arg8[%c1_33, %c48_34] : memref<16x64xf32, #tpu.memory_space<vmem>>, vector<1x16xf32>
    %c7 = arith.constant 7 : index
    %c0_35 = arith.constant 0 : index
    %28 = vector.load %arg10[%c7, %c0_35] : memref<64x16xf32, #tpu.memory_space<vmem>>, vector<1x16xf32>
    tpu.vector_store %arg10[%c7, %c0_35], %27 {strides = array<i32>} : memref<64x16xf32, #tpu.memory_space<vmem>>, vector<1x16xf32>,
    %c2_36 = arith.constant 2 : index
    %c0_37 = arith.constant 0 : index
    %29 = vector.load %arg8[%c2_36, %c0_37] : memref<16x64xf32, #tpu.memory_space<vmem>>, vector<1x16xf32>
    %c8 = arith.constant 8 : index
    %c0_38 = arith.constant 0 : index
    %30 = vector.load %arg10[%c8, %c0_38] : memref<64x16xf32, #tpu.memory_space<vmem>>, vector<1x16xf32>
    tpu.vector_store %arg10[%c8, %c0_38], %29 {strides = array<i32>} : memref<64x16xf32, #tpu.memory_space<vmem>>, vector<1x16xf32>,
    %c2_39 = arith.constant 2 : index
    %c16_40 = arith.constant 16 : index
    %31 = vector.load %arg8[%c2_39, %c16_40] : memref<16x64xf32, #tpu.memory_space<vmem>>, vector<1x16xf32>
    %c9 = arith.constant 9 : index
    %c0_41 = arith.constant 0 : index
    %32 = vector.load %arg10[%c9, %c0_41] : memref<64x16xf32, #tpu.memory_space<vmem>>, vector<1x16xf32>
    tpu.vector_store %arg10[%c9, %c0_41], %31 {strides = array<i32>} : memref<64x16xf32, #tpu.memory_space<vmem>>, vector<1x16xf32>,
    %c2_42 = arith.constant 2 : index
    %c32_43 = arith.constant 32 : index
    %33 = vector.load %arg8[%c2_42, %c32_43] : memref<16x64xf32, #tpu.memory_space<vmem>>, vector<1x16xf32>
    %c10 = arith.constant 10 : index
    %c0_44 = arith.constant 0 : index
    %34 = vector.load %arg10[%c10, %c0_44] : memref<64x16xf32, #tpu.memory_space<vmem>>, vector<1x16xf32>
    tpu.vector_store %arg10[%c10, %c0_44], %33 {strides = array<i32>} : memref<64x16xf32, #tpu.memory_space<vmem>>, vector<1x16xf32>,
    %c2_45 = arith.constant 2 : index
    %c48_46 = arith.constant 48 : index
    %35 = vector.load %arg8[%c2_45, %c48_46] : memref<16x64xf32, #tpu.memory_space<vmem>>, vector<1x16xf32>
    %c11 = arith.constant 11 : index
    %c0_47 = arith.constant 0 : index
    %36 = vector.load %arg10[%c11, %c0_47] : memref<64x16xf32, #tpu.memory_space<vmem>>, vector<1x16xf32>
    tpu.vector_store %arg10[%c11, %c0_47], %35 {strides = array<i32>} : memref<64x16xf32, #tpu.memory_space<vmem>>, vector<1x16xf32>,
    %c3_48 = arith.constant 3 : index
    %c0_49 = arith.constant 0 : index
    %37 = vector.load %arg8[%c3_48, %c0_49] : memref<16x64xf32, #tpu.memory_space<vmem>>, vector<1x16xf32>
    %c12 = arith.constant 12 : index
    %c0_50 = arith.constant 0 : index
    %38 = vector.load %arg10[%c12, %c0_50] : memref<64x16xf32, #tpu.memory_space<vmem>>, vector<1x16xf32>
    tpu.vector_store %arg10[%c12, %c0_50], %37 {strides = array<i32>} : memref<64x16xf32, #tpu.memory_space<vmem>>, vector<1x16xf32>,
    %c3_51 = arith.constant 3 : index
    %c16_52 = arith.constant 16 : index
    %39 = vector.load %arg8[%c3_51, %c16_52] : memref<16x64xf32, #tpu.memory_space<vmem>>, vector<1x16xf32>
    %c13 = arith.constant 13 : index
    %c0_53 = arith.constant 0 : index
    %40 = vector.load %arg10[%c13, %c0_53] : memref<64x16xf32, #tpu.memory_space<vmem>>, vector<1x16xf32>
    tpu.vector_store %arg10[%c13, %c0_53], %39 {strides = array<i32>} : memref<64x16xf32, #tpu.memory_space<vmem>>, vector<1x16xf32>,
    %c3_54 = arith.constant 3 : index
    %c32_55 = arith.constant 32 : index
    %41 = vector.load %arg8[%c3_54, %c32_55] : memref<16x64xf32, #tpu.memory_space<vmem>>, vector<1x16xf32>
    %c14 = arith.constant 14 : index
    %c0_56 = arith.constant 0 : index
    %42 = vector.load %arg10[%c14, %c0_56] : memref<64x16xf32, #tpu.memory_space<vmem>>, vector<1x16xf32>
    tpu.vector_store %arg10[%c14, %c0_56], %41 {strides = array<i32>} : memref<64x16xf32, #tpu.memory_space<vmem>>, vector<1x16xf32>,
    %c3_57 = arith.constant 3 : index
    %c48_58 = arith.constant 48 : index
    %43 = vector.load %arg8[%c3_57, %c48_58] : memref<16x64xf32, #tpu.memory_space<vmem>>, vector<1x16xf32>
    %c15 = arith.constant 15 : index
    %c0_59 = arith.constant 0 : index
    %44 = vector.load %arg10[%c15, %c0_59] : memref<64x16xf32, #tpu.memory_space<vmem>>, vector<1x16xf32>
    tpu.vector_store %arg10[%c15, %c0_59], %43 {strides = array<i32>} : memref<64x16xf32, #tpu.memory_space<vmem>>, vector<1x16xf32>,
    %c4_60 = arith.constant 4 : index
    %c0_61 = arith.constant 0 : index
    %45 = vector.load %arg8[%c4_60, %c0_61] : memref<16x64xf32, #tpu.memory_space<vmem>>, vector<1x16xf32>
    %c16_62 = arith.constant 16 : index
    %c0_63 = arith.constant 0 : index
    %46 = vector.load %arg10[%c16_62, %c0_63] : memref<64x16xf32, #tpu.memory_space<vmem>>, vector<1x16xf32>
    tpu.vector_store %arg10[%c16_62, %c0_63], %45 {strides = array<i32>} : memref<64x16xf32, #tpu.memory_space<vmem>>, vector<1x16xf32>,
    %c4_64 = arith.constant 4 : index
    %c16_65 = arith.constant 16 : index
    %47 = vector.load %arg8[%c4_64, %c16_65] : memref<16x64xf32, #tpu.memory_space<vmem>>, vector<1x16xf32>
    %c17 = arith.constant 17 : index
    %c0_66 = arith.constant 0 : index
    %48 = vector.load %arg10[%c17, %c0_66] : memref<64x16xf32, #tpu.memory_space<vmem>>, vector<1x16xf32>
    tpu.vector_store %arg10[%c17, %c0_66], %47 {strides = array<i32>} : memref<64x16xf32, #tpu.memory_space<vmem>>, vector<1x16xf32>,
    %c4_67 = arith.constant 4 : index
    %c32_68 = arith.constant 32 : index
    %49 = vector.load %arg8[%c4_67, %c32_68] : memref<16x64xf32, #tpu.memory_space<vmem>>, vector<1x16xf32>
    %c18 = arith.constant 18 : index
    %c0_69 = arith.constant 0 : index
    %50 = vector.load %arg10[%c18, %c0_69] : memref<64x16xf32, #tpu.memory_space<vmem>>, vector<1x16xf32>
    tpu.vector_store %arg10[%c18, %c0_69], %49 {strides = array<i32>} : memref<64x16xf32, #tpu.memory_space<vmem>>, vector<1x16xf32>,
    %c4_70 = arith.constant 4 : index
    %c48_71 = arith.constant 48 : index
    %51 = vector.load %arg8[%c4_70, %c48_71] : memref<16x64xf32, #tpu.memory_space<vmem>>, vector<1x16xf32>
    %c19 = arith.constant 19 : index
    %c0_72 = arith.constant 0 : index
    %52 = vector.load %arg10[%c19, %c0_72] : memref<64x16xf32, #tpu.memory_space<vmem>>, vector<1x16xf32>
    tpu.vector_store %arg10[%c19, %c0_72], %51 {strides = array<i32>} : memref<64x16xf32, #tpu.memory_space<vmem>>, vector<1x16xf32>,
    %c5_73 = arith.constant 5 : index
    %c0_74 = arith.constant 0 : index
    %53 = vector.load %arg8[%c5_73, %c0_74] : memref<16x64xf32, #tpu.memory_space<vmem>>, vector<1x16xf32>
    %c20 = arith.constant 20 : index
    %c0_75 = arith.constant 0 : index
    %54 = vector.load %arg10[%c20, %c0_75] : memref<64x16xf32, #tpu.memory_space<vmem>>, vector<1x16xf32>
    tpu.vector_store %arg10[%c20, %c0_75], %53 {strides = array<i32>} : memref<64x16xf32, #tpu.memory_space<vmem>>, vector<1x16xf32>,
    %c5_76 = arith.constant 5 : index
    %c16_77 = arith.constant 16 : index
    %55 = vector.load %arg8[%c5_76, %c16_77] : memref<16x64xf32, #tpu.memory_space<vmem>>, vector<1x16xf32>
    %c21 = arith.constant 21 : index
    %c0_78 = arith.constant 0 : index
    %56 = vector.load %arg10[%c21, %c0_78] : memref<64x16xf32, #tpu.memory_space<vmem>>, vector<1x16xf32>
    tpu.vector_store %arg10[%c21, %c0_78], %55 {strides = array<i32>} : memref<64x16xf32, #tpu.memory_space<vmem>>, vector<1x16xf32>,
    %c5_79 = arith.constant 5 : index
    %c32_80 = arith.constant 32 : index
    %57 = vector.load %arg8[%c5_79, %c32_80] : memref<16x64xf32, #tpu.memory_space<vmem>>, vector<1x16xf32>
    %c22 = arith.constant 22 : index
    %c0_81 = arith.constant 0 : index
    %58 = vector.load %arg10[%c22, %c0_81] : memref<64x16xf32, #tpu.memory_space<vmem>>, vector<1x16xf32>
    tpu.vector_store %arg10[%c22, %c0_81], %57 {strides = array<i32>} : memref<64x16xf32, #tpu.memory_space<vmem>>, vector<1x16xf32>,
    %c5_82 = arith.constant 5 : index
    %c48_83 = arith.constant 48 : index
    %59 = vector.load %arg8[%c5_82, %c48_83] : memref<16x64xf32, #tpu.memory_space<vmem>>, vector<1x16xf32>
    %c23 = arith.constant 23 : index
    %c0_84 = arith.constant 0 : index
    %60 = vector.load %arg10[%c23, %c0_84] : memref<64x16xf32, #tpu.memory_space<vmem>>, vector<1x16xf32>
    tpu.vector_store %arg10[%c23, %c0_84], %59 {strides = array<i32>} : memref<64x16xf32, #tpu.memory_space<vmem>>, vector<1x16xf32>,
    %c6_85 = arith.constant 6 : index
    %c0_86 = arith.constant 0 : index
    %61 = vector.load %arg8[%c6_85, %c0_86] : memref<16x64xf32, #tpu.memory_space<vmem>>, vector<1x16xf32>
    %c24 = arith.constant 24 : index
    %c0_87 = arith.constant 0 : index
    %62 = vector.load %arg10[%c24, %c0_87] : memref<64x16xf32, #tpu.memory_space<vmem>>, vector<1x16xf32>
    tpu.vector_store %arg10[%c24, %c0_87], %61 {strides = array<i32>} : memref<64x16xf32, #tpu.memory_space<vmem>>, vector<1x16xf32>,
    %c6_88 = arith.constant 6 : index
    %c16_89 = arith.constant 16 : index
    %63 = vector.load %arg8[%c6_88, %c16_89] : memref<16x64xf32, #tpu.memory_space<vmem>>, vector<1x16xf32>
    %c25 = arith.constant 25 : index
    %c0_90 = arith.constant 0 : index
    %64 = vector.load %arg10[%c25, %c0_90] : memref<64x16xf32, #tpu.memory_space<vmem>>, vector<1x16xf32>
    tpu.vector_store %arg10[%c25, %c0_90], %63 {strides = array<i32>} : memref<64x16xf32, #tpu.memory_space<vmem>>, vector<1x16xf32>,
    %c6_91 = arith.constant 6 : index
    %c32_92 = arith.constant 32 : index
    %65 = vector.load %arg8[%c6_91, %c32_92] : memref<16x64xf32, #tpu.memory_space<vmem>>, vector<1x16xf32>
    %c26 = arith.constant 26 : index
    %c0_93 = arith.constant 0 : index
    %66 = vector.load %arg10[%c26, %c0_93] : memref<64x16xf32, #tpu.memory_space<vmem>>, vector<1x16xf32>
    tpu.vector_store %arg10[%c26, %c0_93], %65 {strides = array<i32>} : memref<64x16xf32, #tpu.memory_space<vmem>>, vector<1x16xf32>,
    %c6_94 = arith.constant 6 : index
    %c48_95 = arith.constant 48 : index
    %67 = vector.load %arg8[%c6_94, %c48_95] : memref<16x64xf32, #tpu.memory_space<vmem>>, vector<1x16xf32>
    %c27 = arith.constant 27 : index
    %c0_96 = arith.constant 0 : index
    %68 = vector.load %arg10[%c27, %c0_96] : memref<64x16xf32, #tpu.memory_space<vmem>>, vector<1x16xf32>
    tpu.vector_store %arg10[%c27, %c0_96], %67 {strides = array<i32>} : memref<64x16xf32, #tpu.memory_space<vmem>>, vector<1x16xf32>,
    %c7_97 = arith.constant 7 : index
    %c0_98 = arith.constant 0 : index
    %69 = vector.load %arg8[%c7_97, %c0_98] : memref<16x64xf32, #tpu.memory_space<vmem>>, vector<1x16xf32>
    %c28 = arith.constant 28 : index
    %c0_99 = arith.constant 0 : index
    %70 = vector.load %arg10[%c28, %c0_99] : memref<64x16xf32, #tpu.memory_space<vmem>>, vector<1x16xf32>
    tpu.vector_store %arg10[%c28, %c0_99], %69 {strides = array<i32>} : memref<64x16xf32, #tpu.memory_space<vmem>>, vector<1x16xf32>,
    %c7_100 = arith.constant 7 : index
    %c16_101 = arith.constant 16 : index
    %71 = vector.load %arg8[%c7_100, %c16_101] : memref<16x64xf32, #tpu.memory_space<vmem>>, vector<1x16xf32>
    %c29 = arith.constant 29 : index
    %c0_102 = arith.constant 0 : index
    %72 = vector.load %arg10[%c29, %c0_102] : memref<64x16xf32, #tpu.memory_space<vmem>>, vector<1x16xf32>
    tpu.vector_store %arg10[%c29, %c0_102], %71 {strides = array<i32>} : memref<64x16xf32, #tpu.memory_space<vmem>>, vector<1x16xf32>,
    %c7_103 = arith.constant 7 : index
    %c32_104 = arith.constant 32 : index
    %73 = vector.load %arg8[%c7_103, %c32_104] : memref<16x64xf32, #tpu.memory_space<vmem>>, vector<1x16xf32>
    %c30 = arith.constant 30 : index
    %c0_105 = arith.constant 0 : index
    %74 = vector.load %arg10[%c30, %c0_105] : memref<64x16xf32, #tpu.memory_space<vmem>>, vector<1x16xf32>
    tpu.vector_store %arg10[%c30, %c0_105], %73 {strides = array<i32>} : memref<64x16xf32, #tpu.memory_space<vmem>>, vector<1x16xf32>,
    %c7_106 = arith.constant 7 : index
    %c48_107 = arith.constant 48 : index
    %75 = vector.load %arg8[%c7_106, %c48_107] : memref<16x64xf32, #tpu.memory_space<vmem>>, vector<1x16xf32>
    %c31 = arith.constant 31 : index
    %c0_108 = arith.constant 0 : index
    %76 = vector.load %arg10[%c31, %c0_108] : memref<64x16xf32, #tpu.memory_space<vmem>>, vector<1x16xf32>
    tpu.vector_store %arg10[%c31, %c0_108], %75 {strides = array<i32>} : memref<64x16xf32, #tpu.memory_space<vmem>>, vector<1x16xf32>,
    %c8_109 = arith.constant 8 : index
    %c0_110 = arith.constant 0 : index
    %77 = vector.load %arg8[%c8_109, %c0_110] : memref<16x64xf32, #tpu.memory_space<vmem>>, vector<1x16xf32>
    %c32_111 = arith.constant 32 : index
    %c0_112 = arith.constant 0 : index
    %78 = vector.load %arg10[%c32_111, %c0_112] : memref<64x16xf32, #tpu.memory_space<vmem>>, vector<1x16xf32>
    tpu.vector_store %arg10[%c32_111, %c0_112], %77 {strides = array<i32>} : memref<64x16xf32, #tpu.memory_space<vmem>>, vector<1x16xf32>,
    %c8_113 = arith.constant 8 : index
    %c16_114 = arith.constant 16 : index
    %79 = vector.load %arg8[%c8_113, %c16_114] : memref<16x64xf32, #tpu.memory_space<vmem>>, vector<1x16xf32>
    %c33 = arith.constant 33 : index
    %c0_115 = arith.constant 0 : index
    %80 = vector.load %arg10[%c33, %c0_115] : memref<64x16xf32, #tpu.memory_space<vmem>>, vector<1x16xf32>
    tpu.vector_store %arg10[%c33, %c0_115], %79 {strides = array<i32>} : memref<64x16xf32, #tpu.memory_space<vmem>>, vector<1x16xf32>,
    %c8_116 = arith.constant 8 : index
    %c32_117 = arith.constant 32 : index
    %81 = vector.load %arg8[%c8_116, %c32_117] : memref<16x64xf32, #tpu.memory_space<vmem>>, vector<1x16xf32>
    %c34 = arith.constant 34 : index
    %c0_118 = arith.constant 0 : index
    %82 = vector.load %arg10[%c34, %c0_118] : memref<64x16xf32, #tpu.memory_space<vmem>>, vector<1x16xf32>
    tpu.vector_store %arg10[%c34, %c0_118], %81 {strides = array<i32>} : memref<64x16xf32, #tpu.memory_space<vmem>>, vector<1x16xf32>,
    %c8_119 = arith.constant 8 : index
    %c48_120 = arith.constant 48 : index
    %83 = vector.load %arg8[%c8_119, %c48_120] : memref<16x64xf32, #tpu.memory_space<vmem>>, vector<1x16xf32>
    %c35 = arith.constant 35 : index
    %c0_121 = arith.constant 0 : index
    %84 = vector.load %arg10[%c35, %c0_121] : memref<64x16xf32, #tpu.memory_space<vmem>>, vector<1x16xf32>
    tpu.vector_store %arg10[%c35, %c0_121], %83 {strides = array<i32>} : memref<64x16xf32, #tpu.memory_space<vmem>>, vector<1x16xf32>,
    %c9_122 = arith.constant 9 : index
    %c0_123 = arith.constant 0 : index
    %85 = vector.load %arg8[%c9_122, %c0_123] : memref<16x64xf32, #tpu.memory_space<vmem>>, vector<1x16xf32>
    %c36 = arith.constant 36 : index
    %c0_124 = arith.constant 0 : index
    %86 = vector.load %arg10[%c36, %c0_124] : memref<64x16xf32, #tpu.memory_space<vmem>>, vector<1x16xf32>
    tpu.vector_store %arg10[%c36, %c0_124], %85 {strides = array<i32>} : memref<64x16xf32, #tpu.memory_space<vmem>>, vector<1x16xf32>,
    %c9_125 = arith.constant 9 : index
    %c16_126 = arith.constant 16 : index
    %87 = vector.load %arg8[%c9_125, %c16_126] : memref<16x64xf32, #tpu.memory_space<vmem>>, vector<1x16xf32>
    %c37 = arith.constant 37 : index
    %c0_127 = arith.constant 0 : index
    %88 = vector.load %arg10[%c37, %c0_127] : memref<64x16xf32, #tpu.memory_space<vmem>>, vector<1x16xf32>
    tpu.vector_store %arg10[%c37, %c0_127], %87 {strides = array<i32>} : memref<64x16xf32, #tpu.memory_space<vmem>>, vector<1x16xf32>,
    %c9_128 = arith.constant 9 : index
    %c32_129 = arith.constant 32 : index
    %89 = vector.load %arg8[%c9_128, %c32_129] : memref<16x64xf32, #tpu.memory_space<vmem>>, vector<1x16xf32>
    %c38 = arith.constant 38 : index
    %c0_130 = arith.constant 0 : index
    %90 = vector.load %arg10[%c38, %c0_130] : memref<64x16xf32, #tpu.memory_space<vmem>>, vector<1x16xf32>
    tpu.vector_store %arg10[%c38, %c0_130], %89 {strides = array<i32>} : memref<64x16xf32, #tpu.memory_space<vmem>>, vector<1x16xf32>,
    %c9_131 = arith.constant 9 : index
    %c48_132 = arith.constant 48 : index
    %91 = vector.load %arg8[%c9_131, %c48_132] : memref<16x64xf32, #tpu.memory_space<vmem>>, vector<1x16xf32>
    %c39 = arith.constant 39 : index
    %c0_133 = arith.constant 0 : index
    %92 = vector.load %arg10[%c39, %c0_133] : memref<64x16xf32, #tpu.memory_space<vmem>>, vector<1x16xf32>
    tpu.vector_store %arg10[%c39, %c0_133], %91 {strides = array<i32>} : memref<64x16xf32, #tpu.memory_space<vmem>>, vector<1x16xf32>,
    %c10_134 = arith.constant 10 : index
    %c0_135 = arith.constant 0 : index
    %93 = vector.load %arg8[%c10_134, %c0_135] : memref<16x64xf32, #tpu.memory_space<vmem>>, vector<1x16xf32>
    %c40 = arith.constant 40 : index
    %c0_136 = arith.constant 0 : index
    %94 = vector.load %arg10[%c40, %c0_136] : memref<64x16xf32, #tpu.memory_space<vmem>>, vector<1x16xf32>
    tpu.vector_store %arg10[%c40, %c0_136], %93 {strides = array<i32>} : memref<64x16xf32, #tpu.memory_space<vmem>>, vector<1x16xf32>,
    %c10_137 = arith.constant 10 : index
    %c16_138 = arith.constant 16 : index
    %95 = vector.load %arg8[%c10_137, %c16_138] : memref<16x64xf32, #tpu.memory_space<vmem>>, vector<1x16xf32>
    %c41 = arith.constant 41 : index
    %c0_139 = arith.constant 0 : index
    %96 = vector.load %arg10[%c41, %c0_139] : memref<64x16xf32, #tpu.memory_space<vmem>>, vector<1x16xf32>
    tpu.vector_store %arg10[%c41, %c0_139], %95 {strides = array<i32>} : memref<64x16xf32, #tpu.memory_space<vmem>>, vector<1x16xf32>,
    %c10_140 = arith.constant 10 : index
    %c32_141 = arith.constant 32 : index
    %97 = vector.load %arg8[%c10_140, %c32_141] : memref<16x64xf32, #tpu.memory_space<vmem>>, vector<1x16xf32>
    %c42 = arith.constant 42 : index
    %c0_142 = arith.constant 0 : index
    %98 = vector.load %arg10[%c42, %c0_142] : memref<64x16xf32, #tpu.memory_space<vmem>>, vector<1x16xf32>
    tpu.vector_store %arg10[%c42, %c0_142], %97 {strides = array<i32>} : memref<64x16xf32, #tpu.memory_space<vmem>>, vector<1x16xf32>,
    %c10_143 = arith.constant 10 : index
    %c48_144 = arith.constant 48 : index
    %99 = vector.load %arg8[%c10_143, %c48_144] : memref<16x64xf32, #tpu.memory_space<vmem>>, vector<1x16xf32>
    %c43 = arith.constant 43 : index
    %c0_145 = arith.constant 0 : index
    %100 = vector.load %arg10[%c43, %c0_145] : memref<64x16xf32, #tpu.memory_space<vmem>>, vector<1x16xf32>
    tpu.vector_store %arg10[%c43, %c0_145], %99 {strides = array<i32>} : memref<64x16xf32, #tpu.memory_space<vmem>>, vector<1x16xf32>,
    %c11_146 = arith.constant 11 : index
    %c0_147 = arith.constant 0 : index
    %101 = vector.load %arg8[%c11_146, %c0_147] : memref<16x64xf32, #tpu.memory_space<vmem>>, vector<1x16xf32>
    %c44 = arith.constant 44 : index
    %c0_148 = arith.constant 0 : index
    %102 = vector.load %arg10[%c44, %c0_148] : memref<64x16xf32, #tpu.memory_space<vmem>>, vector<1x16xf32>
    tpu.vector_store %arg10[%c44, %c0_148], %101 {strides = array<i32>} : memref<64x16xf32, #tpu.memory_space<vmem>>, vector<1x16xf32>,
    %c11_149 = arith.constant 11 : index
    %c16_150 = arith.constant 16 : index
    %103 = vector.load %arg8[%c11_149, %c16_150] : memref<16x64xf32, #tpu.memory_space<vmem>>, vector<1x16xf32>
    %c45 = arith.constant 45 : index
    %c0_151 = arith.constant 0 : index
    %104 = vector.load %arg10[%c45, %c0_151] : memref<64x16xf32, #tpu.memory_space<vmem>>, vector<1x16xf32>
    tpu.vector_store %arg10[%c45, %c0_151], %103 {strides = array<i32>} : memref<64x16xf32, #tpu.memory_space<vmem>>, vector<1x16xf32>,
    %c11_152 = arith.constant 11 : index
    %c32_153 = arith.constant 32 : index
    %105 = vector.load %arg8[%c11_152, %c32_153] : memref<16x64xf32, #tpu.memory_space<vmem>>, vector<1x16xf32>
    %c46 = arith.constant 46 : index
    %c0_154 = arith.constant 0 : index
    %106 = vector.load %arg10[%c46, %c0_154] : memref<64x16xf32, #tpu.memory_space<vmem>>, vector<1x16xf32>
    tpu.vector_store %arg10[%c46, %c0_154], %105 {strides = array<i32>} : memref<64x16xf32, #tpu.memory_space<vmem>>, vector<1x16xf32>,
    %c11_155 = arith.constant 11 : index
    %c48_156 = arith.constant 48 : index
    %107 = vector.load %arg8[%c11_155, %c48_156] : memref<16x64xf32, #tpu.memory_space<vmem>>, vector<1x16xf32>
    %c47 = arith.constant 47 : index
    %c0_157 = arith.constant 0 : index
    %108 = vector.load %arg10[%c47, %c0_157] : memref<64x16xf32, #tpu.memory_space<vmem>>, vector<1x16xf32>
    tpu.vector_store %arg10[%c47, %c0_157], %107 {strides = array<i32>} : memref<64x16xf32, #tpu.memory_space<vmem>>, vector<1x16xf32>,
    %c12_158 = arith.constant 12 : index
    %c0_159 = arith.constant 0 : index
    %109 = vector.load %arg8[%c12_158, %c0_159] : memref<16x64xf32, #tpu.memory_space<vmem>>, vector<1x16xf32>
    %c48_160 = arith.constant 48 : index
    %c0_161 = arith.constant 0 : index
    %110 = vector.load %arg10[%c48_160, %c0_161] : memref<64x16xf32, #tpu.memory_space<vmem>>, vector<1x16xf32>
    tpu.vector_store %arg10[%c48_160, %c0_161], %109 {strides = array<i32>} : memref<64x16xf32, #tpu.memory_space<vmem>>, vector<1x16xf32>,
    %c12_162 = arith.constant 12 : index
    %c16_163 = arith.constant 16 : index
    %111 = vector.load %arg8[%c12_162, %c16_163] : memref<16x64xf32, #tpu.memory_space<vmem>>, vector<1x16xf32>
    %c49 = arith.constant 49 : index
    %c0_164 = arith.constant 0 : index
    %112 = vector.load %arg10[%c49, %c0_164] : memref<64x16xf32, #tpu.memory_space<vmem>>, vector<1x16xf32>
    tpu.vector_store %arg10[%c49, %c0_164], %111 {strides = array<i32>} : memref<64x16xf32, #tpu.memory_space<vmem>>, vector<1x16xf32>,
    %c12_165 = arith.constant 12 : index
    %c32_166 = arith.constant 32 : index
    %113 = vector.load %arg8[%c12_165, %c32_166] : memref<16x64xf32, #tpu.memory_space<vmem>>, vector<1x16xf32>
    %c50 = arith.constant 50 : index
    %c0_167 = arith.constant 0 : index
    %114 = vector.load %arg10[%c50, %c0_167] : memref<64x16xf32, #tpu.memory_space<vmem>>, vector<1x16xf32>
    tpu.vector_store %arg10[%c50, %c0_167], %113 {strides = array<i32>} : memref<64x16xf32, #tpu.memory_space<vmem>>, vector<1x16xf32>,
    %c12_168 = arith.constant 12 : index
    %c48_169 = arith.constant 48 : index
    %115 = vector.load %arg8[%c12_168, %c48_169] : memref<16x64xf32, #tpu.memory_space<vmem>>, vector<1x16xf32>
    %c51 = arith.constant 51 : index
    %c0_170 = arith.constant 0 : index
    %116 = vector.load %arg10[%c51, %c0_170] : memref<64x16xf32, #tpu.memory_space<vmem>>, vector<1x16xf32>
    tpu.vector_store %arg10[%c51, %c0_170], %115 {strides = array<i32>} : memref<64x16xf32, #tpu.memory_space<vmem>>, vector<1x16xf32>,
    %c13_171 = arith.constant 13 : index
    %c0_172 = arith.constant 0 : index
    %117 = vector.load %arg8[%c13_171, %c0_172] : memref<16x64xf32, #tpu.memory_space<vmem>>, vector<1x16xf32>
    %c52 = arith.constant 52 : index
    %c0_173 = arith.constant 0 : index
    %118 = vector.load %arg10[%c52, %c0_173] : memref<64x16xf32, #tpu.memory_space<vmem>>, vector<1x16xf32>
    tpu.vector_store %arg10[%c52, %c0_173], %117 {strides = array<i32>} : memref<64x16xf32, #tpu.memory_space<vmem>>, vector<1x16xf32>,
    %c13_174 = arith.constant 13 : index
    %c16_175 = arith.constant 16 : index
    %119 = vector.load %arg8[%c13_174, %c16_175] : memref<16x64xf32, #tpu.memory_space<vmem>>, vector<1x16xf32>
    %c53 = arith.constant 53 : index
    %c0_176 = arith.constant 0 : index
    %120 = vector.load %arg10[%c53, %c0_176] : memref<64x16xf32, #tpu.memory_space<vmem>>, vector<1x16xf32>
    tpu.vector_store %arg10[%c53, %c0_176], %119 {strides = array<i32>} : memref<64x16xf32, #tpu.memory_space<vmem>>, vector<1x16xf32>,
    %c13_177 = arith.constant 13 : index
    %c32_178 = arith.constant 32 : index
    %121 = vector.load %arg8[%c13_177, %c32_178] : memref<16x64xf32, #tpu.memory_space<vmem>>, vector<1x16xf32>
    %c54 = arith.constant 54 : index
    %c0_179 = arith.constant 0 : index
    %122 = vector.load %arg10[%c54, %c0_179] : memref<64x16xf32, #tpu.memory_space<vmem>>, vector<1x16xf32>
    tpu.vector_store %arg10[%c54, %c0_179], %121 {strides = array<i32>} : memref<64x16xf32, #tpu.memory_space<vmem>>, vector<1x16xf32>,
    %c13_180 = arith.constant 13 : index
    %c48_181 = arith.constant 48 : index
    %123 = vector.load %arg8[%c13_180, %c48_181] : memref<16x64xf32, #tpu.memory_space<vmem>>, vector<1x16xf32>
    %c55 = arith.constant 55 : index
    %c0_182 = arith.constant 0 : index
    %124 = vector.load %arg10[%c55, %c0_182] : memref<64x16xf32, #tpu.memory_space<vmem>>, vector<1x16xf32>
    tpu.vector_store %arg10[%c55, %c0_182], %123 {strides = array<i32>} : memref<64x16xf32, #tpu.memory_space<vmem>>, vector<1x16xf32>,
    %c14_183 = arith.constant 14 : index
    %c0_184 = arith.constant 0 : index
    %125 = vector.load %arg8[%c14_183, %c0_184] : memref<16x64xf32, #tpu.memory_space<vmem>>, vector<1x16xf32>
    %c56 = arith.constant 56 : index
    %c0_185 = arith.constant 0 : index
    %126 = vector.load %arg10[%c56, %c0_185] : memref<64x16xf32, #tpu.memory_space<vmem>>, vector<1x16xf32>
    tpu.vector_store %arg10[%c56, %c0_185], %125 {strides = array<i32>} : memref<64x16xf32, #tpu.memory_space<vmem>>, vector<1x16xf32>,
    %c14_186 = arith.constant 14 : index
    %c16_187 = arith.constant 16 : index
    %127 = vector.load %arg8[%c14_186, %c16_187] : memref<16x64xf32, #tpu.memory_space<vmem>>, vector<1x16xf32>
    %c57 = arith.constant 57 : index
    %c0_188 = arith.constant 0 : index
    %128 = vector.load %arg10[%c57, %c0_188] : memref<64x16xf32, #tpu.memory_space<vmem>>, vector<1x16xf32>
    tpu.vector_store %arg10[%c57, %c0_188], %127 {strides = array<i32>} : memref<64x16xf32, #tpu.memory_space<vmem>>, vector<1x16xf32>,
    %c14_189 = arith.constant 14 : index
    %c32_190 = arith.constant 32 : index
    %129 = vector.load %arg8[%c14_189, %c32_190] : memref<16x64xf32, #tpu.memory_space<vmem>>, vector<1x16xf32>
    %c58 = arith.constant 58 : index
    %c0_191 = arith.constant 0 : index
    %130 = vector.load %arg10[%c58, %c0_191] : memref<64x16xf32, #tpu.memory_space<vmem>>, vector<1x16xf32>
    tpu.vector_store %arg10[%c58, %c0_191], %129 {strides = array<i32>} : memref<64x16xf32, #tpu.memory_space<vmem>>, vector<1x16xf32>,
    %c14_192 = arith.constant 14 : index
    %c48_193 = arith.constant 48 : index
    %131 = vector.load %arg8[%c14_192, %c48_193] : memref<16x64xf32, #tpu.memory_space<vmem>>, vector<1x16xf32>
    %c59 = arith.constant 59 : index
    %c0_194 = arith.constant 0 : index
    %132 = vector.load %arg10[%c59, %c0_194] : memref<64x16xf32, #tpu.memory_space<vmem>>, vector<1x16xf32>
    tpu.vector_store %arg10[%c59, %c0_194], %131 {strides = array<i32>} : memref<64x16xf32, #tpu.memory_space<vmem>>, vector<1x16xf32>,
    %c15_195 = arith.constant 15 : index
    %c0_196 = arith.constant 0 : index
    %133 = vector.load %arg8[%c15_195, %c0_196] : memref<16x64xf32, #tpu.memory_space<vmem>>, vector<1x16xf32>
    %c60 = arith.constant 60 : index
    %c0_197 = arith.constant 0 : index
    %134 = vector.load %arg10[%c60, %c0_197] : memref<64x16xf32, #tpu.memory_space<vmem>>, vector<1x16xf32>
    tpu.vector_store %arg10[%c60, %c0_197], %133 {strides = array<i32>} : memref<64x16xf32, #tpu.memory_space<vmem>>, vector<1x16xf32>,
    %c15_198 = arith.constant 15 : index
    %c16_199 = arith.constant 16 : index
    %135 = vector.load %arg8[%c15_198, %c16_199] : memref<16x64xf32, #tpu.memory_space<vmem>>, vector<1x16xf32>
    %c61 = arith.constant 61 : index
    %c0_200 = arith.constant 0 : index
    %136 = vector.load %arg10[%c61, %c0_200] : memref<64x16xf32, #tpu.memory_space<vmem>>, vector<1x16xf32>
    tpu.vector_store %arg10[%c61, %c0_200], %135 {strides = array<i32>} : memref<64x16xf32, #tpu.memory_space<vmem>>, vector<1x16xf32>,
    %c15_201 = arith.constant 15 : index
    %c32_202 = arith.constant 32 : index
    %137 = vector.load %arg8[%c15_201, %c32_202] : memref<16x64xf32, #tpu.memory_space<vmem>>, vector<1x16xf32>
    %c62 = arith.constant 62 : index
    %c0_203 = arith.constant 0 : index
    %138 = vector.load %arg10[%c62, %c0_203] : memref<64x16xf32, #tpu.memory_space<vmem>>, vector<1x16xf32>
    tpu.vector_store %arg10[%c62, %c0_203], %137 {strides = array<i32>} : memref<64x16xf32, #tpu.memory_space<vmem>>, vector<1x16xf32>,
    %c15_204 = arith.constant 15 : index
    %c48_205 = arith.constant 48 : index
    %139 = vector.load %arg8[%c15_204, %c48_205] : memref<16x64xf32, #tpu.memory_space<vmem>>, vector<1x16xf32>
    %c63 = arith.constant 63 : index
    %c0_206 = arith.constant 0 : index
    %140 = vector.load %arg10[%c63, %c0_206] : memref<64x16xf32, #tpu.memory_space<vmem>>, vector<1x16xf32>
    tpu.vector_store %arg10[%c63, %c0_206], %139 {strides = array<i32>} : memref<64x16xf32, #tpu.memory_space<vmem>>, vector<1x16xf32>,
    %c0_207 = arith.constant 0 : index
    %c0_208 = arith.constant 0 : index
    %141 = vector.load %arg10[%c0_207, %c0_208] : memref<64x16xf32, #tpu.memory_space<vmem>>, vector<16x16xf32>
    %c0_209 = arith.constant 0 : index
    %c0_210 = arith.constant 0 : index
    %142 = vector.load %arg9[%c0_209, %c0_210] : memref<128x16xf32, #tpu.memory_space<vmem>>, vector<16x16xf32>
    %c64 = arith.constant 64 : index
    %c0_211 = arith.constant 0 : index
    %143 = vector.load %arg9[%c64, %c0_211] : memref<128x16xf32, #tpu.memory_space<vmem>>, vector<16x16xf32>
    %cst_212 = arith.constant dense<0.000000e+00> : vector<16x16xf32>
    %144 = tpu.matmul %142, %141, %cst_212 {dimension_numbers = #tpu.dot_dimension_numbers<[1], [1], [0], [0], [0, 0, 1, 0], [], []>} : vector<16x16xf32>, vector<16x16xf32>, vector<16x16xf32> -> vector<16x16xf32>
    %cst_213 = arith.constant 6.250000e-02 : f32
    %145 = vector.broadcast %cst_213 : f32 to vector<16x16xf32>
    %146 = arith.mulf %144, %145 : vector<16x16xf32>
    %cst_214 = arith.constant dense<0xFF800000> : vector<16xf32>
    %147 = vector.multi_reduction <maximumf>, %146, %cst_214 [1] : vector<16x16xf32> to vector<16xf32>
    %148 = vector.shape_cast %147 : vector<16xf32> to vector<16x1xf32>
    %149 = vector.broadcast %148 : vector<16x1xf32> to vector<16x16xf32>
    %150 = arith.subf %146, %149 : vector<16x16xf32>
    %151 = math.exp %150 : vector<16x16xf32>
    %cst_215 = arith.constant dense<0.000000e+00> : vector<16xf32>
    %152 = vector.multi_reduction <add>, %151, %cst_215 [1] : vector<16x16xf32> to vector<16xf32>
    %153 = vector.shape_cast %152 : vector<16xf32> to vector<16x1xf32>
    %154 = tpu.reciprocal %153 : vector<16x1xf32> -> vector<16x1xf32>
    %155 = vector.broadcast %154 : vector<16x1xf32> to vector<16x16xf32>
    %156 = arith.mulf %151, %155 : vector<16x16xf32>
    %cst_216 = arith.constant dense<0.000000e+00> : vector<16x16xf32>
    %157 = tpu.matmul %156, %143, %cst_216 {dimension_numbers = #tpu.dot_dimension_numbers<[1], [0], [0], [1], [0, 0, 1, 1], [], []>} : vector<16x16xf32>, vector<16x16xf32>, vector<16x16xf32> -> vector<16x16xf32>
    %c0_217 = arith.constant 0 : index
    %c0_218 = arith.constant 0 : index
    %158 = vector.load %arg11[%c0_217, %c0_218] : memref<16x64xf32, #tpu.memory_space<vmem>>, vector<16x16xf32>
    tpu.vector_store %arg11[%c0_217, %c0_218], %157 {strides = array<i32>} : memref<16x64xf32, #tpu.memory_space<vmem>>, vector<16x16xf32>,
    %c16_219 = arith.constant 16 : index
    %c0_220 = arith.constant 0 : index
    %159 = vector.load %arg10[%c16_219, %c0_220] : memref<64x16xf32, #tpu.memory_space<vmem>>, vector<16x16xf32>
    %c16_221 = arith.constant 16 : index
    %c0_222 = arith.constant 0 : index
    %160 = vector.load %arg9[%c16_221, %c0_222] : memref<128x16xf32, #tpu.memory_space<vmem>>, vector<16x16xf32>
    %c80 = arith.constant 80 : index
    %c0_223 = arith.constant 0 : index
    %161 = vector.load %arg9[%c80, %c0_223] : memref<128x16xf32, #tpu.memory_space<vmem>>, vector<16x16xf32>
    %cst_224 = arith.constant dense<0.000000e+00> : vector<16x16xf32>
    %162 = tpu.matmul %160, %159, %cst_224 {dimension_numbers = #tpu.dot_dimension_numbers<[1], [1], [0], [0], [0, 0, 1, 0], [], []>} : vector<16x16xf32>, vector<16x16xf32>, vector<16x16xf32> -> vector<16x16xf32>
    %cst_225 = arith.constant 6.250000e-02 : f32
    %163 = vector.broadcast %cst_225 : f32 to vector<16x16xf32>
    %164 = arith.mulf %162, %163 : vector<16x16xf32>
    %cst_226 = arith.constant dense<0xFF800000> : vector<16xf32>
    %165 = vector.multi_reduction <maximumf>, %164, %cst_226 [1] : vector<16x16xf32> to vector<16xf32>
    %166 = vector.shape_cast %165 : vector<16xf32> to vector<16x1xf32>
    %167 = vector.broadcast %166 : vector<16x1xf32> to vector<16x16xf32>
    %168 = arith.subf %164, %167 : vector<16x16xf32>
    %169 = math.exp %168 : vector<16x16xf32>
    %cst_227 = arith.constant dense<0.000000e+00> : vector<16xf32>
    %170 = vector.multi_reduction <add>, %169, %cst_227 [1] : vector<16x16xf32> to vector<16xf32>
    %171 = vector.shape_cast %170 : vector<16xf32> to vector<16x1xf32>
    %172 = tpu.reciprocal %171 : vector<16x1xf32> -> vector<16x1xf32>
    %173 = vector.broadcast %172 : vector<16x1xf32> to vector<16x16xf32>
    %174 = arith.mulf %169, %173 : vector<16x16xf32>
    %cst_228 = arith.constant dense<0.000000e+00> : vector<16x16xf32>
    %175 = tpu.matmul %174, %161, %cst_228 {dimension_numbers = #tpu.dot_dimension_numbers<[1], [0], [0], [1], [0, 0, 1, 1], [], []>} : vector<16x16xf32>, vector<16x16xf32>, vector<16x16xf32> -> vector<16x16xf32>
    %c0_229 = arith.constant 0 : index
    %c16_230 = arith.constant 16 : index
    %176 = vector.load %arg11[%c0_229, %c16_230] : memref<16x64xf32, #tpu.memory_space<vmem>>, vector<16x16xf32>
    tpu.vector_store %arg11[%c0_229, %c16_230], %175 {strides = array<i32>} : memref<16x64xf32, #tpu.memory_space<vmem>>, vector<16x16xf32>,
    %c32_231 = arith.constant 32 : index
    %c0_232 = arith.constant 0 : index
    %177 = vector.load %arg10[%c32_231, %c0_232] : memref<64x16xf32, #tpu.memory_space<vmem>>, vector<16x16xf32>
    %c32_233 = arith.constant 32 : index
    %c0_234 = arith.constant 0 : index
    %178 = vector.load %arg9[%c32_233, %c0_234] : memref<128x16xf32, #tpu.memory_space<vmem>>, vector<16x16xf32>
    %c96 = arith.constant 96 : index
    %c0_235 = arith.constant 0 : index
    %179 = vector.load %arg9[%c96, %c0_235] : memref<128x16xf32, #tpu.memory_space<vmem>>, vector<16x16xf32>
    %cst_236 = arith.constant dense<0.000000e+00> : vector<16x16xf32>
    %180 = tpu.matmul %178, %177, %cst_236 {dimension_numbers = #tpu.dot_dimension_numbers<[1], [1], [0], [0], [0, 0, 1, 0], [], []>} : vector<16x16xf32>, vector<16x16xf32>, vector<16x16xf32> -> vector<16x16xf32>
    %cst_237 = arith.constant 6.250000e-02 : f32
    %181 = vector.broadcast %cst_237 : f32 to vector<16x16xf32>
    %182 = arith.mulf %180, %181 : vector<16x16xf32>
    %cst_238 = arith.constant dense<0xFF800000> : vector<16xf32>
    %183 = vector.multi_reduction <maximumf>, %182, %cst_238 [1] : vector<16x16xf32> to vector<16xf32>
    %184 = vector.shape_cast %183 : vector<16xf32> to vector<16x1xf32>
    %185 = vector.broadcast %184 : vector<16x1xf32> to vector<16x16xf32>
    %186 = arith.subf %182, %185 : vector<16x16xf32>
    %187 = math.exp %186 : vector<16x16xf32>
    %cst_239 = arith.constant dense<0.000000e+00> : vector<16xf32>
    %188 = vector.multi_reduction <add>, %187, %cst_239 [1] : vector<16x16xf32> to vector<16xf32>
    %189 = vector.shape_cast %188 : vector<16xf32> to vector<16x1xf32>
    %190 = tpu.reciprocal %189 : vector<16x1xf32> -> vector<16x1xf32>
    %191 = vector.broadcast %190 : vector<16x1xf32> to vector<16x16xf32>
    %192 = arith.mulf %187, %191 : vector<16x16xf32>
    %cst_240 = arith.constant dense<0.000000e+00> : vector<16x16xf32>
    %193 = tpu.matmul %192, %179, %cst_240 {dimension_numbers = #tpu.dot_dimension_numbers<[1], [0], [0], [1], [0, 0, 1, 1], [], []>} : vector<16x16xf32>, vector<16x16xf32>, vector<16x16xf32> -> vector<16x16xf32>
    %c0_241 = arith.constant 0 : index
    %c32_242 = arith.constant 32 : index
    %194 = vector.load %arg11[%c0_241, %c32_242] : memref<16x64xf32, #tpu.memory_space<vmem>>, vector<16x16xf32>
    tpu.vector_store %arg11[%c0_241, %c32_242], %193 {strides = array<i32>} : memref<16x64xf32, #tpu.memory_space<vmem>>, vector<16x16xf32>,
    %c48_243 = arith.constant 48 : index
    %c0_244 = arith.constant 0 : index
    %195 = vector.load %arg10[%c48_243, %c0_244] : memref<64x16xf32, #tpu.memory_space<vmem>>, vector<16x16xf32>
    %c48_245 = arith.constant 48 : index
    %c0_246 = arith.constant 0 : index
    %196 = vector.load %arg9[%c48_245, %c0_246] : memref<128x16xf32, #tpu.memory_space<vmem>>, vector<16x16xf32>
    %c112 = arith.constant 112 : index
    %c0_247 = arith.constant 0 : index
    %197 = vector.load %arg9[%c112, %c0_247] : memref<128x16xf32, #tpu.memory_space<vmem>>, vector<16x16xf32>
    %cst_248 = arith.constant dense<0.000000e+00> : vector<16x16xf32>
    %198 = tpu.matmul %196, %195, %cst_248 {dimension_numbers = #tpu.dot_dimension_numbers<[1], [1], [0], [0], [0, 0, 1, 0], [], []>} : vector<16x16xf32>, vector<16x16xf32>, vector<16x16xf32> -> vector<16x16xf32>
    %cst_249 = arith.constant 6.250000e-02 : f32
    %199 = vector.broadcast %cst_249 : f32 to vector<16x16xf32>
    %200 = arith.mulf %198, %199 : vector<16x16xf32>
    %cst_250 = arith.constant dense<0xFF800000> : vector<16xf32>
    %201 = vector.multi_reduction <maximumf>, %200, %cst_250 [1] : vector<16x16xf32> to vector<16xf32>
    %202 = vector.shape_cast %201 : vector<16xf32> to vector<16x1xf32>
    %203 = vector.broadcast %202 : vector<16x1xf32> to vector<16x16xf32>
    %204 = arith.subf %200, %203 : vector<16x16xf32>
    %205 = math.exp %204 : vector<16x16xf32>
    %cst_251 = arith.constant dense<0.000000e+00> : vector<16xf32>
    %206 = vector.multi_reduction <add>, %205, %cst_251 [1] : vector<16x16xf32> to vector<16xf32>
    %207 = vector.shape_cast %206 : vector<16xf32> to vector<16x1xf32>
    %208 = tpu.reciprocal %207 : vector<16x1xf32> -> vector<16x1xf32>
    %209 = vector.broadcast %208 : vector<16x1xf32> to vector<16x16xf32>
    %210 = arith.mulf %205, %209 : vector<16x16xf32>
    %cst_252 = arith.constant dense<0.000000e+00> : vector<16x16xf32>
    %211 = tpu.matmul %210, %197, %cst_252 {dimension_numbers = #tpu.dot_dimension_numbers<[1], [0], [0], [1], [0, 0, 1, 1], [], []>} : vector<16x16xf32>, vector<16x16xf32>, vector<16x16xf32> -> vector<16x16xf32>
    %c0_253 = arith.constant 0 : index
    %c48_254 = arith.constant 48 : index
    %212 = vector.load %arg11[%c0_253, %c48_254] : memref<16x64xf32, #tpu.memory_space<vmem>>, vector<16x16xf32>
    tpu.vector_store %arg11[%c0_253, %c48_254], %211 {strides = array<i32>} : memref<16x64xf32, #tpu.memory_space<vmem>>, vector<16x16xf32>,
    %c0_255 = arith.constant 0 : index
    %c0_256 = arith.constant 0 : index
    %213 = vector.load %arg11[%c0_255, %c0_256] : memref<16x64xf32, #tpu.memory_space<vmem>>, vector<16x64xf32>
    %c0_257 = arith.constant 0 : index
    %c0_258 = arith.constant 0 : index
    %214 = vector.load %arg5[%c0_257, %c0_258] : memref<64x64xf32, #tpu.memory_space<vmem>>, vector<64x64xf32>
    %cst_259 = arith.constant dense<0.000000e+00> : vector<16x64xf32>
    %215 = tpu.matmul %213, %214, %cst_259 {dimension_numbers = #tpu.dot_dimension_numbers<[1], [1], [0], [0], [0, 0, 1, 0], [], []>} : vector<16x64xf32>, vector<64x64xf32>, vector<16x64xf32> -> vector<16x64xf32>
    %c0_260 = arith.constant 0 : index
    %c0_261 = arith.constant 0 : index
    %216 = vector.load %arg6[%c0_260, %c0_261] : memref<1x64xf32, #tpu.memory_space<vmem>>, vector<1x64xf32>
    %217 = vector.broadcast %216 : vector<1x64xf32> to vector<16x64xf32>
    %218 = arith.addf %215, %217 : vector<16x64xf32>
    %c0_262 = arith.constant 0 : index
    %c0_263 = arith.constant 0 : index
    %219 = vector.load %arg7[%c0_262, %c0_263] : memref<16x64xf32, #tpu.memory_space<vmem>>, vector<16x64xf32>
    tpu.vector_store %arg7[%c0_262, %c0_263], %218 {strides = array<i32>} : memref<16x64xf32, #tpu.memory_space<vmem>>, vector<16x64xf32>,
    return
  }
}

</mosaic_0001>

<llo_original>
// kernel: mha_forward.1
$region0: #{mha_forward.1}
  #allocation0 [shape = 'u32[]', space=smem, size = 0x4, offset = 0x4, fixed_abs, tag = 'smem constant byte address 0x4 - core index']
  #allocation1 [shape = 'u32[144,128]{1,0:T(1,128)}', space=vmem, size = 0x12000, scoped, tag = 'internal scratch']
  #allocation2 [shape = 'f32[16,64]{1,0:T(8,128)}', space=vmem, size = 0x2000, scoped, tag = 'scratch operand']
  #allocation3 [shape = 'f32[128,16]{1,0:T(8,128)}', space=vmem, size = 0x10000, scoped, tag = 'scratch operand']
  #allocation4 [shape = 'f32[64,16]{1,0:T(8,128)}', space=vmem, size = 0x8000, scoped, tag = 'scratch operand']
  #allocation5 [shape = 'f32[16,64]{1,0:T(8,128)}', space=vmem, size = 0x2000, scoped, tag = 'scratch operand']
  %s0 = inlined_call_operand.vmem [shape: f32[16,64], index: 0, kind: input, shape index: {}]
  %s1 = inlined_call_operand.vmem [shape: f32[64,64], index: 1, kind: input, shape index: {}]
  %s2 = inlined_call_operand.vmem [shape: f32[1,64], index: 2, kind: input, shape index: {}]
  %s3 = inlined_call_operand.vmem [shape: f32[128,64], index: 3, kind: input, shape index: {}]
  %s4 = inlined_call_operand.vmem [shape: f32[128,1], index: 4, kind: input, shape index: {}]
  %s5 = inlined_call_operand.vmem [shape: f32[64,64], index: 5, kind: input, shape index: {}]
  %s6 = inlined_call_operand.vmem [shape: f32[1,64], index: 6, kind: input, shape index: {}]
  %s7 = inlined_call_operand.hbm [shape: f32[16,64], index: 7, kind: output, shape index: {}]
  %s8 = sld [smem:[#allocation0]]
  $region38: #{mha_forward.1} parent=0
    _
  %s10 = ssub.s32 1, %s8
  %s11 = scalar_select 0, %s10, %s8
  $region1: #{mha_forward.1} parent=0
    #allocation6 [shape = 'u8[8192]{0}', space=vmem, size = 0x2000, scoped, tag = 'output window, operand 0, single buffered']
    #allocation7 [shape = 's32[1]{0}', space=sflag, size = 0x4, scoped, tag = 'scoped memory for mha_forward.1']
    %12 = vsyncpa [#allocation7], 0
    // Predicated region
    $region2: #{mha_forward.1} parent=1 // pred_check
      _
    $region3: #{mha_forward.1} parent=1 // pred_check_branch
      %14 = sbr.rel (0) target = $region5
    $region4: #{mha_forward.1} parent=1 // pred_region
      _
    $region5: #{mha_forward.1} parent=1 // pred_fallthru
      _
    // Predicated region
    $region6: #{mha_forward.1} parent=1 // pred_check
      _
    $region7: #{mha_forward.1} parent=1 // pred_check_branch
      %16 = sbr.rel (0) target = $region9
    $region8: #{mha_forward.1} parent=1 // pred_region
      _
    $region9: #{mha_forward.1} parent=1 // pred_fallthru
      _
    // Predicated region
    $region10: #{mha_forward.1} parent=1 // pred_check
      _
    $region11: #{mha_forward.1} parent=1 // pred_check_branch
      %18 = sbr.rel (0) target = $region13
    $region12: #{mha_forward.1} parent=1 // pred_region
      _
    $region13: #{mha_forward.1} parent=1 // pred_fallthru
      _
    // Predicated region
    $region14: #{mha_forward.1} parent=1 // pred_check
      _
    $region15: #{mha_forward.1} parent=1 // pred_check_branch
      %20 = sbr.rel (0) target = $region17
    $region16: #{mha_forward.1} parent=1 // pred_region
      _
    $region17: #{mha_forward.1} parent=1 // pred_fallthru
      _
    // Predicated region
    $region18: #{mha_forward.1} parent=1 // pred_check
      _
    $region19: #{mha_forward.1} parent=1 // pred_check_branch
      %22 = sbr.rel (0) target = $region21
    $region20: #{mha_forward.1} parent=1 // pred_region
      _
    $region21: #{mha_forward.1} parent=1 // pred_fallthru
      _
    // Predicated region
    $region22: #{mha_forward.1} parent=1 // pred_check
      _
    $region23: #{mha_forward.1} parent=1 // pred_check_branch
      %24 = sbr.rel (0) target = $region25
    $region24: #{mha_forward.1} parent=1 // pred_region
      _
    $region25: #{mha_forward.1} parent=1 // pred_fallthru
      _
    // Predicated region
    $region26: #{mha_forward.1} parent=1 // pred_check
      _
    $region27: #{mha_forward.1} parent=1 // pred_check_branch
      %26 = sbr.rel (0) target = $region29
    $region28: #{mha_forward.1} parent=1 // pred_region
      _
    $region29: #{mha_forward.1} parent=1 // pred_fallthru
      _
    %v27 = vld [vmem:[%s0] sm:$0xff]
    %v28 = vld [vmem:[%s0 + $0x8] sm:$0xff]
    %v29 = vld [vmem:[%s1] sm:$0xff]
    %v30 = vld [vmem:[%s1 + $0x8] sm:$0xff]
    %v31 = vld [vmem:[%s1 + $0x10] sm:$0xff]
    %v32 = vld [vmem:[%s1 + $0x18] sm:$0xff]
    %v33 = vld [vmem:[%s1 + $0x20] sm:$0xff]
    %v34 = vld [vmem:[%s1 + $0x28] sm:$0xff]
    %v35 = vld [vmem:[%s1 + $0x30] sm:$0xff]
    %v36 = vld [vmem:[%s1 + $0x38] sm:$0xff]
    %v37 = vld [vmem:[%s2] sm:$0x1]
    %v39 = vlaneseq
    %v40 = vshrl.u32 %v39, 7
    %v41 = vsub.s32 0, %v40
    %v42 = vrot.slane %v37, %v41
    %vm44 = vcmask 523264
    %v46 = vsel %vm44, %v27, 0
    %v49 = vsel %vm44, %v28, 0
    %v52 = vsel %vm44, %v29, 0
    %v55 = vsel %vm44, %v30, 0
    %v58 = vsel %vm44, %v31, 0
    %v61 = vsel %vm44, %v32, 0
    %v64 = vsel %vm44, %v33, 0
    %v67 = vsel %vm44, %v34, 0
    %v70 = vsel %vm44, %v35, 0
    %v73 = vsel %vm44, %v36, 0
    %75 = vmatprep.subr.mxu0 0.0
    %76 = vmatpush1.xpose.msra.mxu0 %v52
    %77 = vmatprep.subr.mxu0 0.0
    %78 = vmatpush1.xpose.msra.mxu0 %v55
    %79 = vmatprep.subr.mxu0 0.0
    %80 = vmatpush1.xpose.msra.mxu0 %v58
    %81 = vmatprep.subr.mxu0 0.0
    %82 = vmatpush1.xpose.msra.mxu0 %v61
    %83 = vmatprep.subr.mxu0 0.0
    %84 = vmatpush1.xpose.msra.mxu0 %v64
    %85 = vmatprep.subr.mxu0 0.0
    %86 = vmatpush1.xpose.msra.mxu0 %v67
    %87 = vmatprep.subr.mxu0 0.0
    %88 = vmatpush1.xpose.msra.mxu0 %v70
    %89 = vmatprep.subr.mxu0 0.0
    %90 = vmatpush1.xpose.msra.mxu0 %v73
    %91 = vmatprep.subr.mxu0 0.0
    %92 = vmatpush1.xpose.msra.mxu0 0.0
    %93 = vmatprep.subr.mxu0 0.0
    %94 = vmatpush1.xpose.msra.mxu0 0.0
    %95 = vmatprep.subr.mxu0 0.0
    %96 = vmatpush1.xpose.msra.mxu0 0.0
    %97 = vmatprep.subr.mxu0 0.0
    %98 = vmatpush1.xpose.msra.mxu0 0.0
    %99 = vmatprep.subr.mxu0 0.0
    %100 = vmatpush1.xpose.msra.mxu0 0.0
    %101 = vmatprep.subr.mxu0 0.0
    %102 = vmatpush1.xpose.msra.mxu0 0.0
    %103 = vmatprep.subr.mxu0 0.0
    %104 = vmatpush1.xpose.msra.mxu0 0.0
    %105 = vmatprep.subr.mxu0 0.0
    %106 = vmatpush1.xpose.msra.mxu0 0.0
    %107 = vmatprep.subr.mxu0 0.0
    %108 = vmatpush1.xpose.msra.mxu0 0.0
    %109 = vmatprep.subr.mxu0 0.0
    %110 = vmatpush1.xpose.msra.mxu0 0.0
    %111 = vmatprep.subr.mxu0 0.0
    %112 = vmatpush1.xpose.msra.mxu0 0.0
    %113 = vmatprep.subr.mxu0 0.0
    %114 = vmatpush1.xpose.msra.mxu0 0.0
    %115 = vmatprep.subr.mxu0 0.0
    %116 = vmatpush1.xpose.msra.mxu0 0.0
    %117 = vmatprep.subr.mxu0 0.0
    %118 = vmatpush1.xpose.msra.mxu0 0.0
    %119 = vmatprep.subr.mxu0 0.0
    %120 = vmatpush1.xpose.msra.mxu0 0.0
    %121 = vmatprep.subr.mxu0 0.0
    %122 = vmatpush1.xpose.msra.mxu0 0.0
    %123 = vmatprep.subr.mxu0 0.0
    %124 = vmatpush1.xpose.msra.mxu0 0.0
    %125 = vmatprep.subr.mxu0 0.0
    %126 = vmatpush1.xpose.msra.mxu0 0.0
    %127 = vmatprep.subr.mxu0 0.0
    %128 = vmatpush1.xpose.msra.mxu0 0.0
    %129 = vmatprep.subr.mxu0 0.0
    %130 = vmatpush1.xpose.msra.mxu0 0.0
    %131 = vmatprep.subr.mxu0 0.0
    %132 = vmatpush1.xpose.msra.mxu0 0.0
    %133 = vmatprep.subr.mxu0 0.0
    %134 = vmatpush1.xpose.msra.mxu0 0.0
    %135 = vmatprep.subr.mxu0 0.0
    %136 = vmatpush1.xpose.msra.mxu0 0.0
    %137 = vmatprep.subr.mxu0 0.0
    %138 = vmatpush1.xpose.msra.mxu0 0.0
    %139 = vmatprep.mubr.f32.mxu0 0.0
    %140 = vmatmul.mubr.f32.gmra.mrb[0].mxu0 %v46
    %v141 = vpop.f32.mrb[0].mxu0
    %v142 = vadd.f32 %v42, %v141
    %v143 = vpop.f32.mrb[0].mxu0
    %144 = vmatprep.mubr.f32.mxu0 0.0
    %145 = vmatmul.mubr.f32.gmra.mrb[0].mxu0 %v49
    %v146 = vpop.f32.mrb[0].mxu0
    %v147 = vadd.f32 %v42, %v146
    %v148 = vpop.f32.mrb[0].mxu0
    %149 = vdwg.mxu0
    %150 = vst.msk [vmem:[#allocation2] sm:$0xff] %vm44, %v142
    %151 = vst.msk [vmem:[#allocation2 + $0x8] sm:$0xff] %vm44, %v147
    %v152 = vld [vmem:[%s3] sm:$0xff]
    %v153 = vld [vmem:[%s3 + $0x8] sm:$0xff]
    %v154 = vld [vmem:[%s3 + $0x10] sm:$0xff]
    %v155 = vld [vmem:[%s3 + $0x18] sm:$0xff]
    %v156 = vld [vmem:[%s3 + $0x20] sm:$0xff]
    %v157 = vld [vmem:[%s3 + $0x28] sm:$0xff]
    %v158 = vld [vmem:[%s3 + $0x30] sm:$0xff]
    %v159 = vld [vmem:[%s3 + $0x38] sm:$0xff]
    %v160 = vld [vmem:[%s3 + $0x40] sm:$0xff]
    %v161 = vld [vmem:[%s3 + $0x48] sm:$0xff]
    %v162 = vld [vmem:[%s3 + $0x50] sm:$0xff]
    %v163 = vld [vmem:[%s3 + $0x58] sm:$0xff]
    %v164 = vld [vmem:[%s3 + $0x60] sm:$0xff]
    %v165 = vld [vmem:[%s3 + $0x68] sm:$0xff]
    %v166 = vld [vmem:[%s3 + $0x70] sm:$0xff]
    %v167 = vld [vmem:[%s3 + $0x78] sm:$0xff]
    %v168 = vld [vmem:[%s4] sm:$0xff]
    %v169 = vld [vmem:[%s4 + $0x8] sm:$0xff]
    %v170 = vld [vmem:[%s4 + $0x10] sm:$0xff]
    %v171 = vld [vmem:[%s4 + $0x18] sm:$0xff]
    %v172 = vld [vmem:[%s4 + $0x20] sm:$0xff]
    %v173 = vld [vmem:[%s4 + $0x28] sm:$0xff]
    %v174 = vld [vmem:[%s4 + $0x30] sm:$0xff]
    %v175 = vld [vmem:[%s4 + $0x38] sm:$0xff]
    %v176 = vld [vmem:[%s4 + $0x40] sm:$0xff]
    %v177 = vld [vmem:[%s4 + $0x48] sm:$0xff]
    %v178 = vld [vmem:[%s4 + $0x50] sm:$0xff]
    %v179 = vld [vmem:[%s4 + $0x58] sm:$0xff]
    %v180 = vld [vmem:[%s4 + $0x60] sm:$0xff]
    %v181 = vld [vmem:[%s4 + $0x68] sm:$0xff]
    %v182 = vld [vmem:[%s4 + $0x70] sm:$0xff]
    %v183 = vld [vmem:[%s4 + $0x78] sm:$0xff]
    %185 = vset.pattern.permute.xlu0 0
    %186 = vperm.xlu0 %185, %v168
    %v187 = vpop.permute.xlu0 %186
    %190 = vset.pattern.permute.xlu0 0
    %191 = vperm.xlu0 %190, %v169
    %v192 = vpop.permute.xlu0 %191
    %195 = vset.pattern.permute.xlu0 0
    %196 = vperm.xlu0 %195, %v170
    %v197 = vpop.permute.xlu0 %196
    %200 = vset.pattern.permute.xlu0 0
    %201 = vperm.xlu0 %200, %v171
    %v202 = vpop.permute.xlu0 %201
    %205 = vset.pattern.permute.xlu0 0
    %206 = vperm.xlu0 %205, %v172
    %v207 = vpop.permute.xlu0 %206
    %210 = vset.pattern.permute.xlu0 0
    %211 = vperm.xlu0 %210, %v173
    %v212 = vpop.permute.xlu0 %211
    %215 = vset.pattern.permute.xlu0 0
    %216 = vperm.xlu0 %215, %v174
    %v217 = vpop.permute.xlu0 %216
    %220 = vset.pattern.permute.xlu0 0
    %221 = vperm.xlu0 %220, %v175
    %v222 = vpop.permute.xlu0 %221
    %225 = vset.pattern.permute.xlu0 0
    %226 = vperm.xlu0 %225, %v176
    %v227 = vpop.permute.xlu0 %226
    %230 = vset.pattern.permute.xlu0 0
    %231 = vperm.xlu0 %230, %v177
    %v232 = vpop.permute.xlu0 %231
    %235 = vset.pattern.permute.xlu0 0
    %236 = vperm.xlu0 %235, %v178
    %v237 = vpop.permute.xlu0 %236
    %240 = vset.pattern.permute.xlu0 0
    %241 = vperm.xlu0 %240, %v179
    %v242 = vpop.permute.xlu0 %241
    %245 = vset.pattern.permute.xlu0 0
    %246 = vperm.xlu0 %245, %v180
    %v247 = vpop.permute.xlu0 %246
    %250 = vset.pattern.permute.xlu0 0
    %251 = vperm.xlu0 %250, %v181
    %v252 = vpop.permute.xlu0 %251
    %255 = vset.pattern.permute.xlu0 0
    %256 = vperm.xlu0 %255, %v182
    %v257 = vpop.permute.xlu0 %256
    %260 = vset.pattern.permute.xlu0 0
    %261 = vperm.xlu0 %260, %v183
    %v262 = vpop.permute.xlu0 %261
    %v265 = vsel %vm44, %v152, 0
    %v268 = vsel %vm44, %v153, 0
    %v271 = vsel %vm44, %v154, 0
    %v274 = vsel %vm44, %v155, 0
    %v277 = vsel %vm44, %v156, 0
    %v280 = vsel %vm44, %v157, 0
    %v283 = vsel %vm44, %v158, 0
    %v286 = vsel %vm44, %v159, 0
    %v289 = vsel %vm44, %v160, 0
    %v292 = vsel %vm44, %v161, 0
    %v295 = vsel %vm44, %v162, 0
    %v298 = vsel %vm44, %v163, 0
    %v301 = vsel %vm44, %v164, 0
    %v304 = vsel %vm44, %v165, 0
    %v307 = vsel %vm44, %v166, 0
    %v310 = vsel %vm44, %v167, 0
    %312 = vmatprep.subr.mxu0 0.0
    %313 = vmatpush1.xpose.msra.mxu0 %v46
    %314 = vmatprep.subr.mxu0 0.0
    %315 = vmatpush1.xpose.msra.mxu0 %v49
    %316 = vmatprep.subr.mxu0 0.0
    %317 = vmatpush1.xpose.msra.mxu0 0.0
    %318 = vmatprep.subr.mxu0 0.0
    %319 = vmatpush1.xpose.msra.mxu0 0.0
    %320 = vmatprep.subr.mxu0 0.0
    %321 = vmatpush1.xpose.msra.mxu0 0.0
    %322 = vmatprep.subr.mxu0 0.0
    %323 = vmatpush1.xpose.msra.mxu0 0.0
    %324 = vmatprep.subr.mxu0 0.0
    %325 = vmatpush1.xpose.msra.mxu0 0.0
    %326 = vmatprep.subr.mxu0 0.0
    %327 = vmatpush1.xpose.msra.mxu0 0.0
    %328 = vmatprep.subr.mxu0 0.0
    %329 = vmatpush1.xpose.msra.mxu0 0.0
    %330 = vmatprep.subr.mxu0 0.0
    %331 = vmatpush1.xpose.msra.mxu0 0.0
    %332 = vmatprep.subr.mxu0 0.0
    %333 = vmatpush1.xpose.msra.mxu0 0.0
    %334 = vmatprep.subr.mxu0 0.0
    %335 = vmatpush1.xpose.msra.mxu0 0.0
    %336 = vmatprep.subr.mxu0 0.0
    %337 = vmatpush1.xpose.msra.mxu0 0.0
    %338 = vmatprep.subr.mxu0 0.0
    %339 = vmatpush1.xpose.msra.mxu0 0.0
    %340 = vmatprep.subr.mxu0 0.0
    %341 = vmatpush1.xpose.msra.mxu0 0.0
    %342 = vmatprep.subr.mxu0 0.0
    %343 = vmatpush1.xpose.msra.mxu0 0.0
    %344 = vmatprep.subr.mxu0 0.0
    %345 = vmatpush1.xpose.msra.mxu0 0.0
    %346 = vmatprep.subr.mxu0 0.0
    %347 = vmatpush1.xpose.msra.mxu0 0.0
    %348 = vmatprep.subr.mxu0 0.0
    %349 = vmatpush1.xpose.msra.mxu0 0.0
    %350 = vmatprep.subr.mxu0 0.0
    %351 = vmatpush1.xpose.msra.mxu0 0.0
    %352 = vmatprep.subr.mxu0 0.0
    %353 = vmatpush1.xpose.msra.mxu0 0.0
    %354 = vmatprep.subr.mxu0 0.0
    %355 = vmatpush1.xpose.msra.mxu0 0.0
    %356 = vmatprep.subr.mxu0 0.0
    %357 = vmatpush1.xpose.msra.mxu0 0.0
    %358 = vmatprep.subr.mxu0 0.0
    %359 = vmatpush1.xpose.msra.mxu0 0.0
    %360 = vmatprep.subr.mxu0 0.0
    %361 = vmatpush1.xpose.msra.mxu0 0.0
    %362 = vmatprep.subr.mxu0 0.0
    %363 = vmatpush1.xpose.msra.mxu0 0.0
    %364 = vmatprep.subr.mxu0 0.0
    %365 = vmatpush1.xpose.msra.mxu0 0.0
    %366 = vmatprep.subr.mxu0 0.0
    %367 = vmatpush1.xpose.msra.mxu0 0.0
    %368 = vmatprep.subr.mxu0 0.0
    %369 = vmatpush1.xpose.msra.mxu0 0.0
    %370 = vmatprep.subr.mxu0 0.0
    %371 = vmatpush1.xpose.msra.mxu0 0.0
    %372 = vmatprep.subr.mxu0 0.0
    %373 = vmatpush1.xpose.msra.mxu0 0.0
    %374 = vmatprep.subr.mxu0 0.0
    %375 = vmatpush1.xpose.msra.mxu0 0.0
    %376 = vmatprep.mubr.f32.mxu0 0.0
    %377 = vmatmul.mubr.f32.gmra.mrb[0].mxu0 %v265
    %v378 = vpop.f32.mrb[0].mxu0
    %v379 = vadd.f32 %v187, %v378
    %v380 = vpop.f32.mrb[0].mxu0
    %381 = vmatprep.mubr.f32.mxu0 0.0
    %382 = vmatmul.mubr.f32.gmra.mrb[0].mxu0 %v268
    %v383 = vpop.f32.mrb[0].mxu0
    %v384 = vadd.f32 %v192, %v383
    %v385 = vpop.f32.mrb[0].mxu0
    %386 = vmatprep.mubr.f32.mxu0 0.0
    %387 = vmatmul.mubr.f32.gmra.mrb[0].mxu0 %v271
    %v388 = vpop.f32.mrb[0].mxu0
    %v389 = vadd.f32 %v197, %v388
    %v390 = vpop.f32.mrb[0].mxu0
    %391 = vmatprep.mubr.f32.mxu0 0.0
    %392 = vmatmul.mubr.f32.gmra.mrb[0].mxu0 %v274
    %v393 = vpop.f32.mrb[0].mxu0
    %v394 = vadd.f32 %v202, %v393
    %v395 = vpop.f32.mrb[0].mxu0
    %396 = vmatprep.mubr.f32.mxu0 0.0
    %397 = vmatmul.mubr.f32.gmra.mrb[0].mxu0 %v277
    %v398 = vpop.f32.mrb[0].mxu0
    %v399 = vadd.f32 %v207, %v398
    %v400 = vpop.f32.mrb[0].mxu0
    %401 = vmatprep.mubr.f32.mxu0 0.0
    %402 = vmatmul.mubr.f32.gmra.mrb[0].mxu0 %v280
    %v403 = vpop.f32.mrb[0].mxu0
    %v404 = vadd.f32 %v212, %v403
    %v405 = vpop.f32.mrb[0].mxu0
    %406 = vmatprep.mubr.f32.mxu0 0.0
    %407 = vmatmul.mubr.f32.gmra.mrb[0].mxu0 %v283
    %v408 = vpop.f32.mrb[0].mxu0
    %v409 = vadd.f32 %v217, %v408
    %v410 = vpop.f32.mrb[0].mxu0
    %411 = vmatprep.mubr.f32.mxu0 0.0
    %412 = vmatmul.mubr.f32.gmra.mrb[0].mxu0 %v286
    %v413 = vpop.f32.mrb[0].mxu0
    %v414 = vadd.f32 %v222, %v413
    %v415 = vpop.f32.mrb[0].mxu0
    %416 = vmatprep.mubr.f32.mxu0 0.0
    %417 = vmatmul.mubr.f32.gmra.mrb[0].mxu0 %v289
    %v418 = vpop.f32.mrb[0].mxu0
    %v419 = vadd.f32 %v227, %v418
    %v420 = vpop.f32.mrb[0].mxu0
    %421 = vmatprep.mubr.f32.mxu0 0.0
    %422 = vmatmul.mubr.f32.gmra.mrb[0].mxu0 %v292
    %v423 = vpop.f32.mrb[0].mxu0
    %v424 = vadd.f32 %v232, %v423
    %v425 = vpop.f32.mrb[0].mxu0
    %426 = vmatprep.mubr.f32.mxu0 0.0
    %427 = vmatmul.mubr.f32.gmra.mrb[0].mxu0 %v295
    %v428 = vpop.f32.mrb[0].mxu0
    %v429 = vadd.f32 %v237, %v428
    %v430 = vpop.f32.mrb[0].mxu0
    %431 = vmatprep.mubr.f32.mxu0 0.0
    %432 = vmatmul.mubr.f32.gmra.mrb[0].mxu0 %v298
    %v433 = vpop.f32.mrb[0].mxu0
    %v434 = vadd.f32 %v242, %v433
    %v435 = vpop.f32.mrb[0].mxu0
    %436 = vmatprep.mubr.f32.mxu0 0.0
    %437 = vmatmul.mubr.f32.gmra.mrb[0].mxu0 %v301
    %v438 = vpop.f32.mrb[0].mxu0
    %v439 = vadd.f32 %v247, %v438
    %v440 = vpop.f32.mrb[0].mxu0
    %441 = vmatprep.mubr.f32.mxu0 0.0
    %442 = vmatmul.mubr.f32.gmra.mrb[0].mxu0 %v304
    %v443 = vpop.f32.mrb[0].mxu0
    %v444 = vadd.f32 %v252, %v443
    %v445 = vpop.f32.mrb[0].mxu0
    %446 = vmatprep.mubr.f32.mxu0 0.0
    %447 = vmatmul.mubr.f32.gmra.mrb[0].mxu0 %v307
    %v448 = vpop.f32.mrb[0].mxu0
    %v449 = vadd.f32 %v257, %v448
    %v450 = vpop.f32.mrb[0].mxu0
    %451 = vmatprep.mubr.f32.mxu0 0.0
    %452 = vmatmul.mubr.f32.gmra.mrb[0].mxu0 %v310
    %v453 = vpop.f32.mrb[0].mxu0
    %v454 = vadd.f32 %v262, %v453
    %v455 = vpop.f32.mrb[0].mxu0
    %456 = vdwg.mxu0
    %vm457 = vcmask 130048
    %458 = vst.msk [vmem:[#allocation3] sm:$0xff] %vm457, %v379
    %459 = vst.msk [vmem:[#allocation3 + $0x8] sm:$0xff] %vm457, %v384
    %460 = vst.msk [vmem:[#allocation3 + $0x10] sm:$0xff] %vm457, %v389
    %461 = vst.msk [vmem:[#allocation3 + $0x18] sm:$0xff] %vm457, %v394
    %462 = vst.msk [vmem:[#allocation3 + $0x20] sm:$0xff] %vm457, %v399
    %463 = vst.msk [vmem:[#allocation3 + $0x28] sm:$0xff] %vm457, %v404
    %464 = vst.msk [vmem:[#allocation3 + $0x30] sm:$0xff] %vm457, %v409
    %465 = vst.msk [vmem:[#allocation3 + $0x38] sm:$0xff] %vm457, %v414
    %466 = vst.msk [vmem:[#allocation3 + $0x40] sm:$0xff] %vm457, %v419
    %467 = vst.msk [vmem:[#allocation3 + $0x48] sm:$0xff] %vm457, %v424
    %468 = vst.msk [vmem:[#allocation3 + $0x50] sm:$0xff] %vm457, %v429
    %469 = vst.msk [vmem:[#allocation3 + $0x58] sm:$0xff] %vm457, %v434
    %470 = vst.msk [vmem:[#allocation3 + $0x60] sm:$0xff] %vm457, %v439
    %471 = vst.msk [vmem:[#allocation3 + $0x68] sm:$0xff] %vm457, %v444
    %472 = vst.msk [vmem:[#allocation3 + $0x70] sm:$0xff] %vm457, %v449
    %473 = vst.msk [vmem:[#allocation3 + $0x78] sm:$0xff] %vm457, %v454
    %v474 = vld [vmem:[#allocation2] sm:$0x1]
    %vm475 = vcmask 122880
    %476 = vst.msk [vmem:[#allocation4] sm:$0x1] %vm475, %v474
    %v477 = vld [vmem:[#allocation2] sm:$0x1]
    %479 = vrot.lane.b32.xlu0 %v477, 112
    %v480 = vpop.permute.xlu0 %479
    %482 = vst.msk [vmem:[#allocation4 + $0x1] sm:$0x1] %vm475, %v480
    %v483 = vld [vmem:[#allocation2] sm:$0x1]
    %485 = vrot.lane.b32.xlu0 %v483, 96
    %v486 = vpop.permute.xlu0 %485
    %488 = vst.msk [vmem:[#allocation4 + $0x2] sm:$0x1] %vm475, %v486
    %v489 = vld [vmem:[#allocation2] sm:$0x1]
    %491 = vrot.lane.b32.xlu0 %v489, 80
    %v492 = vpop.permute.xlu0 %491
    %494 = vst.msk [vmem:[#allocation4 + $0x3] sm:$0x1] %vm475, %v492
    %v495 = vld [vmem:[#allocation2 + $0x1] sm:$0x1]
    %496 = vst.msk [vmem:[#allocation4 + $0x4] sm:$0x1] %vm475, %v495
    %v497 = vld [vmem:[#allocation2 + $0x1] sm:$0x1]
    %499 = vrot.lane.b32.xlu0 %v497, 112
    %v500 = vpop.permute.xlu0 %499
    %502 = vst.msk [vmem:[#allocation4 + $0x5] sm:$0x1] %vm475, %v500
    %v503 = vld [vmem:[#allocation2 + $0x1] sm:$0x1]
    %505 = vrot.lane.b32.xlu0 %v503, 96
    %v506 = vpop.permute.xlu0 %505
    %508 = vst.msk [vmem:[#allocation4 + $0x6] sm:$0x1] %vm475, %v506
    %v509 = vld [vmem:[#allocation2 + $0x1] sm:$0x1]
    %511 = vrot.lane.b32.xlu0 %v509, 80
    %v512 = vpop.permute.xlu0 %511
    %514 = vst.msk [vmem:[#allocation4 + $0x7] sm:$0x1] %vm475, %v512
    %v515 = vld [vmem:[#allocation2 + $0x2] sm:$0x1]
    %516 = vst.msk [vmem:[#allocation4 + $0x8] sm:$0x1] %vm475, %v515
    %v517 = vld [vmem:[#allocation2 + $0x2] sm:$0x1]
    %519 = vrot.lane.b32.xlu0 %v517, 112
    %v520 = vpop.permute.xlu0 %519
    %522 = vst.msk [vmem:[#allocation4 + $0x9] sm:$0x1] %vm475, %v520
    %v523 = vld [vmem:[#allocation2 + $0x2] sm:$0x1]
    %525 = vrot.lane.b32.xlu0 %v523, 96
    %v526 = vpop.permute.xlu0 %525
    %528 = vst.msk [vmem:[#allocation4 + $0xa] sm:$0x1] %vm475, %v526
    %v529 = vld [vmem:[#allocation2 + $0x2] sm:$0x1]
    %531 = vrot.lane.b32.xlu0 %v529, 80
    %v532 = vpop.permute.xlu0 %531
    %534 = vst.msk [vmem:[#allocation4 + $0xb] sm:$0x1] %vm475, %v532
    %v535 = vld [vmem:[#allocation2 + $0x3] sm:$0x1]
    %536 = vst.msk [vmem:[#allocation4 + $0xc] sm:$0x1] %vm475, %v535
    %v537 = vld [vmem:[#allocation2 + $0x3] sm:$0x1]
    %539 = vrot.lane.b32.xlu0 %v537, 112
    %v540 = vpop.permute.xlu0 %539
    %542 = vst.msk [vmem:[#allocation4 + $0xd] sm:$0x1] %vm475, %v540
    %v543 = vld [vmem:[#allocation2 + $0x3] sm:$0x1]
    %545 = vrot.lane.b32.xlu0 %v543, 96
    %v546 = vpop.permute.xlu0 %545
    %548 = vst.msk [vmem:[#allocation4 + $0xe] sm:$0x1] %vm475, %v546
    %v549 = vld [vmem:[#allocation2 + $0x3] sm:$0x1]
    %551 = vrot.lane.b32.xlu0 %v549, 80
    %v552 = vpop.permute.xlu0 %551
    %554 = vst.msk [vmem:[#allocation4 + $0xf] sm:$0x1] %vm475, %v552
    %v555 = vld [vmem:[#allocation2 + $0x4] sm:$0x1]
    %556 = vst.msk [vmem:[#allocation4 + $0x10] sm:$0x1] %vm475, %v555
    %v557 = vld [vmem:[#allocation2 + $0x4] sm:$0x1]
    %559 = vrot.lane.b32.xlu0 %v557, 112
    %v560 = vpop.permute.xlu0 %559
    %562 = vst.msk [vmem:[#allocation4 + $0x11] sm:$0x1] %vm475, %v560
    %v563 = vld [vmem:[#allocation2 + $0x4] sm:$0x1]
    %565 = vrot.lane.b32.xlu0 %v563, 96
    %v566 = vpop.permute.xlu0 %565
    %568 = vst.msk [vmem:[#allocation4 + $0x12] sm:$0x1] %vm475, %v566
    %v569 = vld [vmem:[#allocation2 + $0x4] sm:$0x1]
    %571 = vrot.lane.b32.xlu0 %v569, 80
    %v572 = vpop.permute.xlu0 %571
    %574 = vst.msk [vmem:[#allocation4 + $0x13] sm:$0x1] %vm475, %v572
    %v575 = vld [vmem:[#allocation2 + $0x5] sm:$0x1]
    %576 = vst.msk [vmem:[#allocation4 + $0x14] sm:$0x1] %vm475, %v575
    %v577 = vld [vmem:[#allocation2 + $0x5] sm:$0x1]
    %579 = vrot.lane.b32.xlu0 %v577, 112
    %v580 = vpop.permute.xlu0 %579
    %582 = vst.msk [vmem:[#allocation4 + $0x15] sm:$0x1] %vm475, %v580
    %v583 = vld [vmem:[#allocation2 + $0x5] sm:$0x1]
    %585 = vrot.lane.b32.xlu0 %v583, 96
    %v586 = vpop.permute.xlu0 %585
    %588 = vst.msk [vmem:[#allocation4 + $0x16] sm:$0x1] %vm475, %v586
    %v589 = vld [vmem:[#allocation2 + $0x5] sm:$0x1]
    %591 = vrot.lane.b32.xlu0 %v589, 80
    %v592 = vpop.permute.xlu0 %591
    %594 = vst.msk [vmem:[#allocation4 + $0x17] sm:$0x1] %vm475, %v592
    %v595 = vld [vmem:[#allocation2 + $0x6] sm:$0x1]
    %596 = vst.msk [vmem:[#allocation4 + $0x18] sm:$0x1] %vm475, %v595
    %v597 = vld [vmem:[#allocation2 + $0x6] sm:$0x1]
    %599 = vrot.lane.b32.xlu0 %v597, 112
    %v600 = vpop.permute.xlu0 %599
    %602 = vst.msk [vmem:[#allocation4 + $0x19] sm:$0x1] %vm475, %v600
    %v603 = vld [vmem:[#allocation2 + $0x6] sm:$0x1]
    %605 = vrot.lane.b32.xlu0 %v603, 96
    %v606 = vpop.permute.xlu0 %605
    %608 = vst.msk [vmem:[#allocation4 + $0x1a] sm:$0x1] %vm475, %v606
    %v609 = vld [vmem:[#allocation2 + $0x6] sm:$0x1]
    %611 = vrot.lane.b32.xlu0 %v609, 80
    %v612 = vpop.permute.xlu0 %611
    %614 = vst.msk [vmem:[#allocation4 + $0x1b] sm:$0x1] %vm475, %v612
    %v615 = vld [vmem:[#allocation2 + $0x7] sm:$0x1]
    %616 = vst.msk [vmem:[#allocation4 + $0x1c] sm:$0x1] %vm475, %v615
    %v617 = vld [vmem:[#allocation2 + $0x7] sm:$0x1]
    %619 = vrot.lane.b32.xlu0 %v617, 112
    %v620 = vpop.permute.xlu0 %619
    %622 = vst.msk [vmem:[#allocation4 + $0x1d] sm:$0x1] %vm475, %v620
    %v623 = vld [vmem:[#allocation2 + $0x7] sm:$0x1]
    %625 = vrot.lane.b32.xlu0 %v623, 96
    %v626 = vpop.permute.xlu0 %625
    %628 = vst.msk [vmem:[#allocation4 + $0x1e] sm:$0x1] %vm475, %v626
    %v629 = vld [vmem:[#allocation2 + $0x7] sm:$0x1]
    %631 = vrot.lane.b32.xlu0 %v629, 80
    %v632 = vpop.permute.xlu0 %631
    %634 = vst.msk [vmem:[#allocation4 + $0x1f] sm:$0x1] %vm475, %v632
    %v635 = vld [vmem:[#allocation2 + $0x8] sm:$0x1]
    %636 = vst.msk [vmem:[#allocation4 + $0x20] sm:$0x1] %vm475, %v635
    %v637 = vld [vmem:[#allocation2 + $0x8] sm:$0x1]
    %639 = vrot.lane.b32.xlu0 %v637, 112
    %v640 = vpop.permute.xlu0 %639
    %642 = vst.msk [vmem:[#allocation4 + $0x21] sm:$0x1] %vm475, %v640
    %v643 = vld [vmem:[#allocation2 + $0x8] sm:$0x1]
    %645 = vrot.lane.b32.xlu0 %v643, 96
    %v646 = vpop.permute.xlu0 %645
    %648 = vst.msk [vmem:[#allocation4 + $0x22] sm:$0x1] %vm475, %v646
    %v649 = vld [vmem:[#allocation2 + $0x8] sm:$0x1]
    %651 = vrot.lane.b32.xlu0 %v649, 80
    %v652 = vpop.permute.xlu0 %651
    %654 = vst.msk [vmem:[#allocation4 + $0x23] sm:$0x1] %vm475, %v652
    %v655 = vld [vmem:[#allocation2 + $0x9] sm:$0x1]
    %656 = vst.msk [vmem:[#allocation4 + $0x24] sm:$0x1] %vm475, %v655
    %v657 = vld [vmem:[#allocation2 + $0x9] sm:$0x1]
    %659 = vrot.lane.b32.xlu0 %v657, 112
    %v660 = vpop.permute.xlu0 %659
    %662 = vst.msk [vmem:[#allocation4 + $0x25] sm:$0x1] %vm475, %v660
    %v663 = vld [vmem:[#allocation2 + $0x9] sm:$0x1]
    %665 = vrot.lane.b32.xlu0 %v663, 96
    %v666 = vpop.permute.xlu0 %665
    %668 = vst.msk [vmem:[#allocation4 + $0x26] sm:$0x1] %vm475, %v666
    %v669 = vld [vmem:[#allocation2 + $0x9] sm:$0x1]
    %671 = vrot.lane.b32.xlu0 %v669, 80
    %v672 = vpop.permute.xlu0 %671
    %674 = vst.msk [vmem:[#allocation4 + $0x27] sm:$0x1] %vm475, %v672
    %v675 = vld [vmem:[#allocation2 + $0xa] sm:$0x1]
    %676 = vst.msk [vmem:[#allocation4 + $0x28] sm:$0x1] %vm475, %v675
    %v677 = vld [vmem:[#allocation2 + $0xa] sm:$0x1]
    %679 = vrot.lane.b32.xlu0 %v677, 112
    %v680 = vpop.permute.xlu0 %679
    %682 = vst.msk [vmem:[#allocation4 + $0x29] sm:$0x1] %vm475, %v680
    %v683 = vld [vmem:[#allocation2 + $0xa] sm:$0x1]
    %685 = vrot.lane.b32.xlu0 %v683, 96
    %v686 = vpop.permute.xlu0 %685
    %688 = vst.msk [vmem:[#allocation4 + $0x2a] sm:$0x1] %vm475, %v686
    %v689 = vld [vmem:[#allocation2 + $0xa] sm:$0x1]
    %691 = vrot.lane.b32.xlu0 %v689, 80
    %v692 = vpop.permute.xlu0 %691
    %694 = vst.msk [vmem:[#allocation4 + $0x2b] sm:$0x1] %vm475, %v692
    %v695 = vld [vmem:[#allocation2 + $0xb] sm:$0x1]
    %696 = vst.msk [vmem:[#allocation4 + $0x2c] sm:$0x1] %vm475, %v695
    %v697 = vld [vmem:[#allocation2 + $0xb] sm:$0x1]
    %699 = vrot.lane.b32.xlu0 %v697, 112
    %v700 = vpop.permute.xlu0 %699
    %702 = vst.msk [vmem:[#allocation4 + $0x2d] sm:$0x1] %vm475, %v700
    %v703 = vld [vmem:[#allocation2 + $0xb] sm:$0x1]
    %705 = vrot.lane.b32.xlu0 %v703, 96
    %v706 = vpop.permute.xlu0 %705
    %708 = vst.msk [vmem:[#allocation4 + $0x2e] sm:$0x1] %vm475, %v706
    %v709 = vld [vmem:[#allocation2 + $0xb] sm:$0x1]
    %711 = vrot.lane.b32.xlu0 %v709, 80
    %v712 = vpop.permute.xlu0 %711
    %714 = vst.msk [vmem:[#allocation4 + $0x2f] sm:$0x1] %vm475, %v712
    %v715 = vld [vmem:[#allocation2 + $0xc] sm:$0x1]
    %716 = vst.msk [vmem:[#allocation4 + $0x30] sm:$0x1] %vm475, %v715
    %v717 = vld [vmem:[#allocation2 + $0xc] sm:$0x1]
    %719 = vrot.lane.b32.xlu0 %v717, 112
    %v720 = vpop.permute.xlu0 %719
    %722 = vst.msk [vmem:[#allocation4 + $0x31] sm:$0x1] %vm475, %v720
    %v723 = vld [vmem:[#allocation2 + $0xc] sm:$0x1]
    %725 = vrot.lane.b32.xlu0 %v723, 96
    %v726 = vpop.permute.xlu0 %725
    %728 = vst.msk [vmem:[#allocation4 + $0x32] sm:$0x1] %vm475, %v726
    %v729 = vld [vmem:[#allocation2 + $0xc] sm:$0x1]
    %731 = vrot.lane.b32.xlu0 %v729, 80
    %v732 = vpop.permute.xlu0 %731
    %734 = vst.msk [vmem:[#allocation4 + $0x33] sm:$0x1] %vm475, %v732
    %v735 = vld [vmem:[#allocation2 + $0xd] sm:$0x1]
    %736 = vst.msk [vmem:[#allocation4 + $0x34] sm:$0x1] %vm475, %v735
    %v737 = vld [vmem:[#allocation2 + $0xd] sm:$0x1]
    %739 = vrot.lane.b32.xlu0 %v737, 112
    %v740 = vpop.permute.xlu0 %739
    %742 = vst.msk [vmem:[#allocation4 + $0x35] sm:$0x1] %vm475, %v740
    %v743 = vld [vmem:[#allocation2 + $0xd] sm:$0x1]
    %745 = vrot.lane.b32.xlu0 %v743, 96
    %v746 = vpop.permute.xlu0 %745
    %748 = vst.msk [vmem:[#allocation4 + $0x36] sm:$0x1] %vm475, %v746
    %v749 = vld [vmem:[#allocation2 + $0xd] sm:$0x1]
    %751 = vrot.lane.b32.xlu0 %v749, 80
    %v752 = vpop.permute.xlu0 %751
    %754 = vst.msk [vmem:[#allocation4 + $0x37] sm:$0x1] %vm475, %v752
    %v755 = vld [vmem:[#allocation2 + $0xe] sm:$0x1]
    %756 = vst.msk [vmem:[#allocation4 + $0x38] sm:$0x1] %vm475, %v755
    %v757 = vld [vmem:[#allocation2 + $0xe] sm:$0x1]
    %759 = vrot.lane.b32.xlu0 %v757, 112
    %v760 = vpop.permute.xlu0 %759
    %762 = vst.msk [vmem:[#allocation4 + $0x39] sm:$0x1] %vm475, %v760
    %v763 = vld [vmem:[#allocation2 + $0xe] sm:$0x1]
    %765 = vrot.lane.b32.xlu0 %v763, 96
    %v766 = vpop.permute.xlu0 %765
    %768 = vst.msk [vmem:[#allocation4 + $0x3a] sm:$0x1] %vm475, %v766
    %v769 = vld [vmem:[#allocation2 + $0xe] sm:$0x1]
    %771 = vrot.lane.b32.xlu0 %v769, 80
    %v772 = vpop.permute.xlu0 %771
    %774 = vst.msk [vmem:[#allocation4 + $0x3b] sm:$0x1] %vm475, %v772
    %v775 = vld [vmem:[#allocation2 + $0xf] sm:$0x1]
    %776 = vst.msk [vmem:[#allocation4 + $0x3c] sm:$0x1] %vm475, %v775
    %v777 = vld [vmem:[#allocation2 + $0xf] sm:$0x1]
    %779 = vrot.lane.b32.xlu0 %v777, 112
    %v780 = vpop.permute.xlu0 %779
    %782 = vst.msk [vmem:[#allocation4 + $0x3d] sm:$0x1] %vm475, %v780
    %v783 = vld [vmem:[#allocation2 + $0xf] sm:$0x1]
    %785 = vrot.lane.b32.xlu0 %v783, 96
    %v786 = vpop.permute.xlu0 %785
    %788 = vst.msk [vmem:[#allocation4 + $0x3e] sm:$0x1] %vm475, %v786
    %v789 = vld [vmem:[#allocation2 + $0xf] sm:$0x1]
    %791 = vrot.lane.b32.xlu0 %v789, 80
    %v792 = vpop.permute.xlu0 %791
    %794 = vst.msk [vmem:[#allocation4 + $0x3f] sm:$0x1] %vm475, %v792
    %v795 = vld [vmem:[#allocation4] sm:$0xff]
    %v796 = vld [vmem:[#allocation4 + $0x8] sm:$0xff]
    %v797 = vld [vmem:[#allocation3] sm:$0xff]
    %v798 = vld [vmem:[#allocation3 + $0x8] sm:$0xff]
    %v799 = vld [vmem:[#allocation3 + $0x40] sm:$0xff]
    %v800 = vld [vmem:[#allocation3 + $0x48] sm:$0xff]
    %v802 = vsel %vm457, %v797, 0
    %v805 = vsel %vm457, %v798, 0
    %v808 = vsel %vm457, %v795, 0
    %v811 = vsel %vm457, %v796, 0
    %813 = vmatprep.subr.mxu0 0.0
    %814 = vmatpush1.xpose.msra.mxu0 %v808
    %815 = vmatprep.subr.mxu0 0.0
    %816 = vmatpush1.xpose.msra.mxu0 %v811
    %817 = vmatprep.subr.mxu0 0.0
    %818 = vmatpush1.xpose.msra.mxu0 0.0
    %819 = vmatprep.subr.mxu0 0.0
    %820 = vmatpush1.xpose.msra.mxu0 0.0
    %821 = vmatprep.subr.mxu0 0.0
    %822 = vmatpush1.xpose.msra.mxu0 0.0
    %823 = vmatprep.subr.mxu0 0.0
    %824 = vmatpush1.xpose.msra.mxu0 0.0
    %825 = vmatprep.subr.mxu0 0.0
    %826 = vmatpush1.xpose.msra.mxu0 0.0
    %827 = vmatprep.subr.mxu0 0.0
    %828 = vmatpush1.xpose.msra.mxu0 0.0
    %829 = vmatprep.subr.mxu0 0.0
    %830 = vmatpush1.xpose.msra.mxu0 0.0
    %831 = vmatprep.subr.mxu0 0.0
    %832 = vmatpush1.xpose.msra.mxu0 0.0
    %833 = vmatprep.subr.mxu0 0.0
    %834 = vmatpush1.xpose.msra.mxu0 0.0
    %835 = vmatprep.subr.mxu0 0.0
    %836 = vmatpush1.xpose.msra.mxu0 0.0
    %837 = vmatprep.subr.mxu0 0.0
    %838 = vmatpush1.xpose.msra.mxu0 0.0
    %839 = vmatprep.subr.mxu0 0.0
    %840 = vmatpush1.xpose.msra.mxu0 0.0
    %841 = vmatprep.subr.mxu0 0.0
    %842 = vmatpush1.xpose.msra.mxu0 0.0
    %843 = vmatprep.subr.mxu0 0.0
    %844 = vmatpush1.xpose.msra.mxu0 0.0
    %845 = vmatprep.subr.mxu0 0.0
    %846 = vmatpush1.xpose.msra.mxu0 0.0
    %847 = vmatprep.subr.mxu0 0.0
    %848 = vmatpush1.xpose.msra.mxu0 0.0
    %849 = vmatprep.subr.mxu0 0.0
    %850 = vmatpush1.xpose.msra.mxu0 0.0
    %851 = vmatprep.subr.mxu0 0.0
    %852 = vmatpush1.xpose.msra.mxu0 0.0
    %853 = vmatprep.subr.mxu0 0.0
    %854 = vmatpush1.xpose.msra.mxu0 0.0
    %855 = vmatprep.subr.mxu0 0.0
    %856 = vmatpush1.xpose.msra.mxu0 0.0
    %857 = vmatprep.subr.mxu0 0.0
    %858 = vmatpush1.xpose.msra.mxu0 0.0
    %859 = vmatprep.subr.mxu0 0.0
    %860 = vmatpush1.xpose.msra.mxu0 0.0
    %861 = vmatprep.subr.mxu0 0.0
    %862 = vmatpush1.xpose.msra.mxu0 0.0
    %863 = vmatprep.subr.mxu0 0.0
    %864 = vmatpush1.xpose.msra.mxu0 0.0
    %865 = vmatprep.subr.mxu0 0.0
    %866 = vmatpush1.xpose.msra.mxu0 0.0
    %867 = vmatprep.subr.mxu0 0.0
    %868 = vmatpush1.xpose.msra.mxu0 0.0
    %869 = vmatprep.subr.mxu0 0.0
    %870 = vmatpush1.xpose.msra.mxu0 0.0
    %871 = vmatprep.subr.mxu0 0.0
    %872 = vmatpush1.xpose.msra.mxu0 0.0
    %873 = vmatprep.subr.mxu0 0.0
    %874 = vmatpush1.xpose.msra.mxu0 0.0
    %875 = vmatprep.subr.mxu0 0.0
    %876 = vmatpush1.xpose.msra.mxu0 0.0
    %877 = vmatprep.mubr.f32.mxu0 0.0
    %878 = vmatmul.mubr.f32.gmra.mrb[0].mxu0 %v802
    %v879 = vpop.f32.mrb[0].mxu0
    %v880 = vadd.f32 0.0, %v879
    %v881 = vpop.f32.mrb[0].mxu0
    %882 = vmatprep.mubr.f32.mxu0 0.0
    %883 = vmatmul.mubr.f32.gmra.mrb[0].mxu0 %v805
    %v884 = vpop.f32.mrb[0].mxu0
    %v885 = vadd.f32 0.0, %v884
    %v886 = vpop.f32.mrb[0].mxu0
    %887 = vdwg.mxu0
    %v888 = vmul.f32 %v880, 0.0625
    %v889 = vmul.f32 %v885, 0.0625
    %v890 = vsel %vm457, %v888, -inf
    %891 = vmax.xlane.f32.xlu0 %v890
    %v892 = vpop.xlane.xlu0 %891
    %v893 = vsel %vm457, %v889, -inf
    %894 = vmax.xlane.f32.xlu0 %v893
    %v895 = vpop.xlane.xlu0 %894
    %v896 = vsub.f32 %v888, %v892
    %v897 = vsub.f32 %v889, %v895
    %v898 = vmul.f32 %v896, 1.442695
    %v899 = vpow.pop %v898
    %v900 = vmul.f32 %v897, 1.442695
    %v901 = vpow.pop %v900
    %v902 = vsel %vm457, %v899, 0.0
    %903 = vadd.xlane.f32.xlu0 %v902
    %v904 = vpop.xlane.xlu0 %903
    %v905 = vsel %vm457, %v901, 0.0
    %906 = vadd.xlane.f32.xlu0 %v905
    %v907 = vpop.xlane.xlu0 %906
    %v908 = vrcp.pop %v904
    %v909 = vrcp.pop %v907
    %v910 = vmul.f32 %v899, %v908
    %v911 = vmul.f32 %v901, %v909
    %v913 = vsel %vm457, %v910, 0
    %v916 = vsel %vm457, %v911, 0
    %918 = vmatprep.subr.mxu0 0.0
    %919 = vmatpush1.msra.mxu0 %v799
    %920 = vmatprep.subr.mxu0 0.0
    %921 = vmatpush1.msra.mxu0 %v800
    %922 = vmatprep.subr.mxu0 0.0
    %923 = vmatpush1.msra.mxu0 0.0
    %924 = vmatprep.subr.mxu0 0.0
    %925 = vmatpush1.msra.mxu0 0.0
    %926 = vmatprep.subr.mxu0 0.0
    %927 = vmatpush1.msra.mxu0 0.0
    %928 = vmatprep.subr.mxu0 0.0
    %929 = vmatpush1.msra.mxu0 0.0
    %930 = vmatprep.subr.mxu0 0.0
    %931 = vmatpush1.msra.mxu0 0.0
    %932 = vmatprep.subr.mxu0 0.0
    %933 = vmatpush1.msra.mxu0 0.0
    %934 = vmatprep.subr.mxu0 0.0
    %935 = vmatpush1.msra.mxu0 0.0
    %936 = vmatprep.subr.mxu0 0.0
    %937 = vmatpush1.msra.mxu0 0.0
    %938 = vmatprep.subr.mxu0 0.0
    %939 = vmatpush1.msra.mxu0 0.0
    %940 = vmatprep.subr.mxu0 0.0
    %941 = vmatpush1.msra.mxu0 0.0
    %942 = vmatprep.subr.mxu0 0.0
    %943 = vmatpush1.msra.mxu0 0.0
    %944 = vmatprep.subr.mxu0 0.0
    %945 = vmatpush1.msra.mxu0 0.0
    %946 = vmatprep.subr.mxu0 0.0
    %947 = vmatpush1.msra.mxu0 0.0
    %948 = vmatprep.subr.mxu0 0.0
    %949 = vmatpush1.msra.mxu0 0.0
    %950 = vmatprep.subr.mxu0 0.0
    %951 = vmatpush1.msra.mxu0 0.0
    %952 = vmatprep.subr.mxu0 0.0
    %953 = vmatpush1.msra.mxu0 0.0
    %954 = vmatprep.subr.mxu0 0.0
    %955 = vmatpush1.msra.mxu0 0.0
    %956 = vmatprep.subr.mxu0 0.0
    %957 = vmatpush1.msra.mxu0 0.0
    %958 = vmatprep.subr.mxu0 0.0
    %959 = vmatpush1.msra.mxu0 0.0
    %960 = vmatprep.subr.mxu0 0.0
    %961 = vmatpush1.msra.mxu0 0.0
    %962 = vmatprep.subr.mxu0 0.0
    %963 = vmatpush1.msra.mxu0 0.0
    %964 = vmatprep.subr.mxu0 0.0
    %965 = vmatpush1.msra.mxu0 0.0
    %966 = vmatprep.subr.mxu0 0.0
    %967 = vmatpush1.msra.mxu0 0.0
    %968 = vmatprep.subr.mxu0 0.0
    %969 = vmatpush1.msra.mxu0 0.0
    %970 = vmatprep.subr.mxu0 0.0
    %971 = vmatpush1.msra.mxu0 0.0
    %972 = vmatprep.subr.mxu0 0.0
    %973 = vmatpush1.msra.mxu0 0.0
    %974 = vmatprep.subr.mxu0 0.0
    %975 = vmatpush1.msra.mxu0 0.0
    %976 = vmatprep.subr.mxu0 0.0
    %977 = vmatpush1.msra.mxu0 0.0
    %978 = vmatprep.subr.mxu0 0.0
    %979 = vmatpush1.msra.mxu0 0.0
    %980 = vmatprep.subr.mxu0 0.0
    %981 = vmatpush1.msra.mxu0 0.0
    %982 = vmatprep.mubr.f32.mxu0 0.0
    %983 = vmatmul.mubr.f32.gmra.mrb[0].mxu0 %v913
    %v984 = vpop.f32.mrb[0].mxu0
    %v985 = vadd.f32 0.0, %v984
    %v986 = vpop.f32.mrb[0].mxu0
    %987 = vmatprep.mubr.f32.mxu0 0.0
    %988 = vmatmul.mubr.f32.gmra.mrb[0].mxu0 %v916
    %v989 = vpop.f32.mrb[0].mxu0
    %v990 = vadd.f32 0.0, %v989
    %v991 = vpop.f32.mrb[0].mxu0
    %992 = vdwg.mxu0
    %993 = vst.msk [vmem:[#allocation5] sm:$0xff] %vm457, %v985
    %994 = vst.msk [vmem:[#allocation5 + $0x8] sm:$0xff] %vm457, %v990
    %v995 = vld [vmem:[#allocation4 + $0x10] sm:$0xff]
    %v996 = vld [vmem:[#allocation4 + $0x18] sm:$0xff]
    %v997 = vld [vmem:[#allocation3 + $0x10] sm:$0xff]
    %v998 = vld [vmem:[#allocation3 + $0x18] sm:$0xff]
    %v999 = vld [vmem:[#allocation3 + $0x50] sm:$0xff]
    %v1000 = vld [vmem:[#allocation3 + $0x58] sm:$0xff]
    %v1002 = vsel %vm457, %v997, 0
    %v1005 = vsel %vm457, %v998, 0
    %v1008 = vsel %vm457, %v995, 0
    %v1011 = vsel %vm457, %v996, 0
    %1013 = vmatprep.subr.mxu0 0.0
    %1014 = vmatpush1.xpose.msra.mxu0 %v1008
    %1015 = vmatprep.subr.mxu0 0.0
    %1016 = vmatpush1.xpose.msra.mxu0 %v1011
    %1017 = vmatprep.subr.mxu0 0.0
    %1018 = vmatpush1.xpose.msra.mxu0 0.0
    %1019 = vmatprep.subr.mxu0 0.0
    %1020 = vmatpush1.xpose.msra.mxu0 0.0
    %1021 = vmatprep.subr.mxu0 0.0
    %1022 = vmatpush1.xpose.msra.mxu0 0.0
    %1023 = vmatprep.subr.mxu0 0.0
    %1024 = vmatpush1.xpose.msra.mxu0 0.0
    %1025 = vmatprep.subr.mxu0 0.0
    %1026 = vmatpush1.xpose.msra.mxu0 0.0
    %1027 = vmatprep.subr.mxu0 0.0
    %1028 = vmatpush1.xpose.msra.mxu0 0.0
    %1029 = vmatprep.subr.mxu0 0.0
    %1030 = vmatpush1.xpose.msra.mxu0 0.0
    %1031 = vmatprep.subr.mxu0 0.0
    %1032 = vmatpush1.xpose.msra.mxu0 0.0
    %1033 = vmatprep.subr.mxu0 0.0
    %1034 = vmatpush1.xpose.msra.mxu0 0.0
    %1035 = vmatprep.subr.mxu0 0.0
    %1036 = vmatpush1.xpose.msra.mxu0 0.0
    %1037 = vmatprep.subr.mxu0 0.0
    %1038 = vmatpush1.xpose.msra.mxu0 0.0
    %1039 = vmatprep.subr.mxu0 0.0
    %1040 = vmatpush1.xpose.msra.mxu0 0.0
    %1041 = vmatprep.subr.mxu0 0.0
    %1042 = vmatpush1.xpose.msra.mxu0 0.0
    %1043 = vmatprep.subr.mxu0 0.0
    %1044 = vmatpush1.xpose.msra.mxu0 0.0
    %1045 = vmatprep.subr.mxu0 0.0
    %1046 = vmatpush1.xpose.msra.mxu0 0.0
    %1047 = vmatprep.subr.mxu0 0.0
    %1048 = vmatpush1.xpose.msra.mxu0 0.0
    %1049 = vmatprep.subr.mxu0 0.0
    %1050 = vmatpush1.xpose.msra.mxu0 0.0
    %1051 = vmatprep.subr.mxu0 0.0
    %1052 = vmatpush1.xpose.msra.mxu0 0.0
    %1053 = vmatprep.subr.mxu0 0.0
    %1054 = vmatpush1.xpose.msra.mxu0 0.0
    %1055 = vmatprep.subr.mxu0 0.0
    %1056 = vmatpush1.xpose.msra.mxu0 0.0
    %1057 = vmatprep.subr.mxu0 0.0
    %1058 = vmatpush1.xpose.msra.mxu0 0.0
    %1059 = vmatprep.subr.mxu0 0.0
    %1060 = vmatpush1.xpose.msra.mxu0 0.0
    %1061 = vmatprep.subr.mxu0 0.0
    %1062 = vmatpush1.xpose.msra.mxu0 0.0
    %1063 = vmatprep.subr.mxu0 0.0
    %1064 = vmatpush1.xpose.msra.mxu0 0.0
    %1065 = vmatprep.subr.mxu0 0.0
    %1066 = vmatpush1.xpose.msra.mxu0 0.0
    %1067 = vmatprep.subr.mxu0 0.0
    %1068 = vmatpush1.xpose.msra.mxu0 0.0
    %1069 = vmatprep.subr.mxu0 0.0
    %1070 = vmatpush1.xpose.msra.mxu0 0.0
    %1071 = vmatprep.subr.mxu0 0.0
    %1072 = vmatpush1.xpose.msra.mxu0 0.0
    %1073 = vmatprep.subr.mxu0 0.0
    %1074 = vmatpush1.xpose.msra.mxu0 0.0
    %1075 = vmatprep.subr.mxu0 0.0
    %1076 = vmatpush1.xpose.msra.mxu0 0.0
    %1077 = vmatprep.mubr.f32.mxu0 0.0
    %1078 = vmatmul.mubr.f32.gmra.mrb[0].mxu0 %v1002
    %v1079 = vpop.f32.mrb[0].mxu0
    %v1080 = vadd.f32 0.0, %v1079
    %v1081 = vpop.f32.mrb[0].mxu0
    %1082 = vmatprep.mubr.f32.mxu0 0.0
    %1083 = vmatmul.mubr.f32.gmra.mrb[0].mxu0 %v1005
    %v1084 = vpop.f32.mrb[0].mxu0
    %v1085 = vadd.f32 0.0, %v1084
    %v1086 = vpop.f32.mrb[0].mxu0
    %1087 = vdwg.mxu0
    %v1088 = vmul.f32 %v1080, 0.0625
    %v1089 = vmul.f32 %v1085, 0.0625
    %v1090 = vsel %vm457, %v1088, -inf
    %1091 = vmax.xlane.f32.xlu0 %v1090
    %v1092 = vpop.xlane.xlu0 %1091
    %v1093 = vsel %vm457, %v1089, -inf
    %1094 = vmax.xlane.f32.xlu0 %v1093
    %v1095 = vpop.xlane.xlu0 %1094
    %v1096 = vsub.f32 %v1088, %v1092
    %v1097 = vsub.f32 %v1089, %v1095
    %v1098 = vmul.f32 %v1096, 1.442695
    %v1099 = vpow.pop %v1098
    %v1100 = vmul.f32 %v1097, 1.442695
    %v1101 = vpow.pop %v1100
    %v1102 = vsel %vm457, %v1099, 0.0
    %1103 = vadd.xlane.f32.xlu0 %v1102
    %v1104 = vpop.xlane.xlu0 %1103
    %v1105 = vsel %vm457, %v1101, 0.0
    %1106 = vadd.xlane.f32.xlu0 %v1105
    %v1107 = vpop.xlane.xlu0 %1106
    %v1108 = vrcp.pop %v1104
    %v1109 = vrcp.pop %v1107
    %v1110 = vmul.f32 %v1099, %v1108
    %v1111 = vmul.f32 %v1101, %v1109
    %v1113 = vsel %vm457, %v1110, 0
    %v1116 = vsel %vm457, %v1111, 0
    %1118 = vmatprep.subr.mxu0 0.0
    %1119 = vmatpush1.msra.mxu0 %v999
    %1120 = vmatprep.subr.mxu0 0.0
    %1121 = vmatpush1.msra.mxu0 %v1000
    %1122 = vmatprep.subr.mxu0 0.0
    %1123 = vmatpush1.msra.mxu0 0.0
    %1124 = vmatprep.subr.mxu0 0.0
    %1125 = vmatpush1.msra.mxu0 0.0
    %1126 = vmatprep.subr.mxu0 0.0
    %1127 = vmatpush1.msra.mxu0 0.0
    %1128 = vmatprep.subr.mxu0 0.0
    %1129 = vmatpush1.msra.mxu0 0.0
    %1130 = vmatprep.subr.mxu0 0.0
    %1131 = vmatpush1.msra.mxu0 0.0
    %1132 = vmatprep.subr.mxu0 0.0
    %1133 = vmatpush1.msra.mxu0 0.0
    %1134 = vmatprep.subr.mxu0 0.0
    %1135 = vmatpush1.msra.mxu0 0.0
    %1136 = vmatprep.subr.mxu0 0.0
    %1137 = vmatpush1.msra.mxu0 0.0
    %1138 = vmatprep.subr.mxu0 0.0
    %1139 = vmatpush1.msra.mxu0 0.0
    %1140 = vmatprep.subr.mxu0 0.0
    %1141 = vmatpush1.msra.mxu0 0.0
    %1142 = vmatprep.subr.mxu0 0.0
    %1143 = vmatpush1.msra.mxu0 0.0
    %1144 = vmatprep.subr.mxu0 0.0
    %1145 = vmatpush1.msra.mxu0 0.0
    %1146 = vmatprep.subr.mxu0 0.0
    %1147 = vmatpush1.msra.mxu0 0.0
    %1148 = vmatprep.subr.mxu0 0.0
    %1149 = vmatpush1.msra.mxu0 0.0
    %1150 = vmatprep.subr.mxu0 0.0
    %1151 = vmatpush1.msra.mxu0 0.0
    %1152 = vmatprep.subr.mxu0 0.0
    %1153 = vmatpush1.msra.mxu0 0.0
    %1154 = vmatprep.subr.mxu0 0.0
    %1155 = vmatpush1.msra.mxu0 0.0
    %1156 = vmatprep.subr.mxu0 0.0
    %1157 = vmatpush1.msra.mxu0 0.0
    %1158 = vmatprep.subr.mxu0 0.0
    %1159 = vmatpush1.msra.mxu0 0.0
    %1160 = vmatprep.subr.mxu0 0.0
    %1161 = vmatpush1.msra.mxu0 0.0
    %1162 = vmatprep.subr.mxu0 0.0
    %1163 = vmatpush1.msra.mxu0 0.0
    %1164 = vmatprep.subr.mxu0 0.0
    %1165 = vmatpush1.msra.mxu0 0.0
    %1166 = vmatprep.subr.mxu0 0.0
    %1167 = vmatpush1.msra.mxu0 0.0
    %1168 = vmatprep.subr.mxu0 0.0
    %1169 = vmatpush1.msra.mxu0 0.0
    %1170 = vmatprep.subr.mxu0 0.0
    %1171 = vmatpush1.msra.mxu0 0.0
    %1172 = vmatprep.subr.mxu0 0.0
    %1173 = vmatpush1.msra.mxu0 0.0
    %1174 = vmatprep.subr.mxu0 0.0
    %1175 = vmatpush1.msra.mxu0 0.0
    %1176 = vmatprep.subr.mxu0 0.0
    %1177 = vmatpush1.msra.mxu0 0.0
    %1178 = vmatprep.subr.mxu0 0.0
    %1179 = vmatpush1.msra.mxu0 0.0
    %1180 = vmatprep.subr.mxu0 0.0
    %1181 = vmatpush1.msra.mxu0 0.0
    %1182 = vmatprep.mubr.f32.mxu0 0.0
    %1183 = vmatmul.mubr.f32.gmra.mrb[0].mxu0 %v1113
    %v1184 = vpop.f32.mrb[0].mxu0
    %v1185 = vadd.f32 0.0, %v1184
    %v1186 = vpop.f32.mrb[0].mxu0
    %1187 = vmatprep.mubr.f32.mxu0 0.0
    %1188 = vmatmul.mubr.f32.gmra.mrb[0].mxu0 %v1116
    %v1189 = vpop.f32.mrb[0].mxu0
    %v1190 = vadd.f32 0.0, %v1189
    %v1191 = vpop.f32.mrb[0].mxu0
    %1192 = vdwg.mxu0
    %1195 = vrot.lane.b32.xlu0 %v1185, 16
    %v1196 = vpop.permute.xlu0 %1195
    %1197 = vrot.lane.b32.xlu0 %v1190, 16
    %v1198 = vpop.permute.xlu0 %1197
    %vm1201 = vcmask 261248
    %1202 = vst.msk [vmem:[#allocation5] sm:$0xff] %vm1201, %v1196
    %1203 = vst.msk [vmem:[#allocation5 + $0x8] sm:$0xff] %vm1201, %v1198
    %v1204 = vld [vmem:[#allocation4 + $0x20] sm:$0xff]
    %v1205 = vld [vmem:[#allocation4 + $0x28] sm:$0xff]
    %v1206 = vld [vmem:[#allocation3 + $0x20] sm:$0xff]
    %v1207 = vld [vmem:[#allocation3 + $0x28] sm:$0xff]
    %v1208 = vld [vmem:[#allocation3 + $0x60] sm:$0xff]
    %v1209 = vld [vmem:[#allocation3 + $0x68] sm:$0xff]
    %v1211 = vsel %vm457, %v1206, 0
    %v1214 = vsel %vm457, %v1207, 0
    %v1217 = vsel %vm457, %v1204, 0
    %v1220 = vsel %vm457, %v1205, 0
    %1222 = vmatprep.subr.mxu0 0.0
    %1223 = vmatpush1.xpose.msra.mxu0 %v1217
    %1224 = vmatprep.subr.mxu0 0.0
    %1225 = vmatpush1.xpose.msra.mxu0 %v1220
    %1226 = vmatprep.subr.mxu0 0.0
    %1227 = vmatpush1.xpose.msra.mxu0 0.0
    %1228 = vmatprep.subr.mxu0 0.0
    %1229 = vmatpush1.xpose.msra.mxu0 0.0
    %1230 = vmatprep.subr.mxu0 0.0
    %1231 = vmatpush1.xpose.msra.mxu0 0.0
    %1232 = vmatprep.subr.mxu0 0.0
    %1233 = vmatpush1.xpose.msra.mxu0 0.0
    %1234 = vmatprep.subr.mxu0 0.0
    %1235 = vmatpush1.xpose.msra.mxu0 0.0
    %1236 = vmatprep.subr.mxu0 0.0
    %1237 = vmatpush1.xpose.msra.mxu0 0.0
    %1238 = vmatprep.subr.mxu0 0.0
    %1239 = vmatpush1.xpose.msra.mxu0 0.0
    %1240 = vmatprep.subr.mxu0 0.0
    %1241 = vmatpush1.xpose.msra.mxu0 0.0
    %1242 = vmatprep.subr.mxu0 0.0
    %1243 = vmatpush1.xpose.msra.mxu0 0.0
    %1244 = vmatprep.subr.mxu0 0.0
    %1245 = vmatpush1.xpose.msra.mxu0 0.0
    %1246 = vmatprep.subr.mxu0 0.0
    %1247 = vmatpush1.xpose.msra.mxu0 0.0
    %1248 = vmatprep.subr.mxu0 0.0
    %1249 = vmatpush1.xpose.msra.mxu0 0.0
    %1250 = vmatprep.subr.mxu0 0.0
    %1251 = vmatpush1.xpose.msra.mxu0 0.0
    %1252 = vmatprep.subr.mxu0 0.0
    %1253 = vmatpush1.xpose.msra.mxu0 0.0
    %1254 = vmatprep.subr.mxu0 0.0
    %1255 = vmatpush1.xpose.msra.mxu0 0.0
    %1256 = vmatprep.subr.mxu0 0.0
    %1257 = vmatpush1.xpose.msra.mxu0 0.0
    %1258 = vmatprep.subr.mxu0 0.0
    %1259 = vmatpush1.xpose.msra.mxu0 0.0
    %1260 = vmatprep.subr.mxu0 0.0
    %1261 = vmatpush1.xpose.msra.mxu0 0.0
    %1262 = vmatprep.subr.mxu0 0.0
    %1263 = vmatpush1.xpose.msra.mxu0 0.0
    %1264 = vmatprep.subr.mxu0 0.0
    %1265 = vmatpush1.xpose.msra.mxu0 0.0
    %1266 = vmatprep.subr.mxu0 0.0
    %1267 = vmatpush1.xpose.msra.mxu0 0.0
    %1268 = vmatprep.subr.mxu0 0.0
    %1269 = vmatpush1.xpose.msra.mxu0 0.0
    %1270 = vmatprep.subr.mxu0 0.0
    %1271 = vmatpush1.xpose.msra.mxu0 0.0
    %1272 = vmatprep.subr.mxu0 0.0
    %1273 = vmatpush1.xpose.msra.mxu0 0.0
    %1274 = vmatprep.subr.mxu0 0.0
    %1275 = vmatpush1.xpose.msra.mxu0 0.0
    %1276 = vmatprep.subr.mxu0 0.0
    %1277 = vmatpush1.xpose.msra.mxu0 0.0
    %1278 = vmatprep.subr.mxu0 0.0
    %1279 = vmatpush1.xpose.msra.mxu0 0.0
    %1280 = vmatprep.subr.mxu0 0.0
    %1281 = vmatpush1.xpose.msra.mxu0 0.0
    %1282 = vmatprep.subr.mxu0 0.0
    %1283 = vmatpush1.xpose.msra.mxu0 0.0
    %1284 = vmatprep.subr.mxu0 0.0
    %1285 = vmatpush1.xpose.msra.mxu0 0.0
    %1286 = vmatprep.mubr.f32.mxu0 0.0
    %1287 = vmatmul.mubr.f32.gmra.mrb[0].mxu0 %v1211
    %v1288 = vpop.f32.mrb[0].mxu0
    %v1289 = vadd.f32 0.0, %v1288
    %v1290 = vpop.f32.mrb[0].mxu0
    %1291 = vmatprep.mubr.f32.mxu0 0.0
    %1292 = vmatmul.mubr.f32.gmra.mrb[0].mxu0 %v1214
    %v1293 = vpop.f32.mrb[0].mxu0
    %v1294 = vadd.f32 0.0, %v1293
    %v1295 = vpop.f32.mrb[0].mxu0
    %1296 = vdwg.mxu0
    %v1297 = vmul.f32 %v1289, 0.0625
    %v1298 = vmul.f32 %v1294, 0.0625
    %v1299 = vsel %vm457, %v1297, -inf
    %1300 = vmax.xlane.f32.xlu0 %v1299
    %v1301 = vpop.xlane.xlu0 %1300
    %v1302 = vsel %vm457, %v1298, -inf
    %1303 = vmax.xlane.f32.xlu0 %v1302
    %v1304 = vpop.xlane.xlu0 %1303
    %v1305 = vsub.f32 %v1297, %v1301
    %v1306 = vsub.f32 %v1298, %v1304
    %v1307 = vmul.f32 %v1305, 1.442695
    %v1308 = vpow.pop %v1307
    %v1309 = vmul.f32 %v1306, 1.442695
    %v1310 = vpow.pop %v1309
    %v1311 = vsel %vm457, %v1308, 0.0
    %1312 = vadd.xlane.f32.xlu0 %v1311
    %v1313 = vpop.xlane.xlu0 %1312
    %v1314 = vsel %vm457, %v1310, 0.0
    %1315 = vadd.xlane.f32.xlu0 %v1314
    %v1316 = vpop.xlane.xlu0 %1315
    %v1317 = vrcp.pop %v1313
    %v1318 = vrcp.pop %v1316
    %v1319 = vmul.f32 %v1308, %v1317
    %v1320 = vmul.f32 %v1310, %v1318
    %v1322 = vsel %vm457, %v1319, 0
    %v1325 = vsel %vm457, %v1320, 0
    %1327 = vmatprep.subr.mxu0 0.0
    %1328 = vmatpush1.msra.mxu0 %v1208
    %1329 = vmatprep.subr.mxu0 0.0
    %1330 = vmatpush1.msra.mxu0 %v1209
    %1331 = vmatprep.subr.mxu0 0.0
    %1332 = vmatpush1.msra.mxu0 0.0
    %1333 = vmatprep.subr.mxu0 0.0
    %1334 = vmatpush1.msra.mxu0 0.0
    %1335 = vmatprep.subr.mxu0 0.0
    %1336 = vmatpush1.msra.mxu0 0.0
    %1337 = vmatprep.subr.mxu0 0.0
    %1338 = vmatpush1.msra.mxu0 0.0
    %1339 = vmatprep.subr.mxu0 0.0
    %1340 = vmatpush1.msra.mxu0 0.0
    %1341 = vmatprep.subr.mxu0 0.0
    %1342 = vmatpush1.msra.mxu0 0.0
    %1343 = vmatprep.subr.mxu0 0.0
    %1344 = vmatpush1.msra.mxu0 0.0
    %1345 = vmatprep.subr.mxu0 0.0
    %1346 = vmatpush1.msra.mxu0 0.0
    %1347 = vmatprep.subr.mxu0 0.0
    %1348 = vmatpush1.msra.mxu0 0.0
    %1349 = vmatprep.subr.mxu0 0.0
    %1350 = vmatpush1.msra.mxu0 0.0
    %1351 = vmatprep.subr.mxu0 0.0
    %1352 = vmatpush1.msra.mxu0 0.0
    %1353 = vmatprep.subr.mxu0 0.0
    %1354 = vmatpush1.msra.mxu0 0.0
    %1355 = vmatprep.subr.mxu0 0.0
    %1356 = vmatpush1.msra.mxu0 0.0
    %1357 = vmatprep.subr.mxu0 0.0
    %1358 = vmatpush1.msra.mxu0 0.0
    %1359 = vmatprep.subr.mxu0 0.0
    %1360 = vmatpush1.msra.mxu0 0.0
    %1361 = vmatprep.subr.mxu0 0.0
    %1362 = vmatpush1.msra.mxu0 0.0
    %1363 = vmatprep.subr.mxu0 0.0
    %1364 = vmatpush1.msra.mxu0 0.0
    %1365 = vmatprep.subr.mxu0 0.0
    %1366 = vmatpush1.msra.mxu0 0.0
    %1367 = vmatprep.subr.mxu0 0.0
    %1368 = vmatpush1.msra.mxu0 0.0
    %1369 = vmatprep.subr.mxu0 0.0
    %1370 = vmatpush1.msra.mxu0 0.0
    %1371 = vmatprep.subr.mxu0 0.0
    %1372 = vmatpush1.msra.mxu0 0.0
    %1373 = vmatprep.subr.mxu0 0.0
    %1374 = vmatpush1.msra.mxu0 0.0
    %1375 = vmatprep.subr.mxu0 0.0
    %1376 = vmatpush1.msra.mxu0 0.0
    %1377 = vmatprep.subr.mxu0 0.0
    %1378 = vmatpush1.msra.mxu0 0.0
    %1379 = vmatprep.subr.mxu0 0.0
    %1380 = vmatpush1.msra.mxu0 0.0
    %1381 = vmatprep.subr.mxu0 0.0
    %1382 = vmatpush1.msra.mxu0 0.0
    %1383 = vmatprep.subr.mxu0 0.0
    %1384 = vmatpush1.msra.mxu0 0.0
    %1385 = vmatprep.subr.mxu0 0.0
    %1386 = vmatpush1.msra.mxu0 0.0
    %1387 = vmatprep.subr.mxu0 0.0
    %1388 = vmatpush1.msra.mxu0 0.0
    %1389 = vmatprep.subr.mxu0 0.0
    %1390 = vmatpush1.msra.mxu0 0.0
    %1391 = vmatprep.mubr.f32.mxu0 0.0
    %1392 = vmatmul.mubr.f32.gmra.mrb[0].mxu0 %v1322
    %v1393 = vpop.f32.mrb[0].mxu0
    %v1394 = vadd.f32 0.0, %v1393
    %v1395 = vpop.f32.mrb[0].mxu0
    %1396 = vmatprep.mubr.f32.mxu0 0.0
    %1397 = vmatmul.mubr.f32.gmra.mrb[0].mxu0 %v1325
    %v1398 = vpop.f32.mrb[0].mxu0
    %v1399 = vadd.f32 0.0, %v1398
    %v1400 = vpop.f32.mrb[0].mxu0
    %1401 = vdwg.mxu0
    %1404 = vrot.lane.b32.xlu0 %v1394, 32
    %v1405 = vpop.permute.xlu0 %1404
    %1406 = vrot.lane.b32.xlu0 %v1399, 32
    %v1407 = vpop.permute.xlu0 %1406
    %vm1410 = vcmask 392448
    %1411 = vst.msk [vmem:[#allocation5] sm:$0xff] %vm1410, %v1405
    %1412 = vst.msk [vmem:[#allocation5 + $0x8] sm:$0xff] %vm1410, %v1407
    %v1413 = vld [vmem:[#allocation4 + $0x30] sm:$0xff]
    %v1414 = vld [vmem:[#allocation4 + $0x38] sm:$0xff]
    %v1415 = vld [vmem:[#allocation3 + $0x30] sm:$0xff]
    %v1416 = vld [vmem:[#allocation3 + $0x38] sm:$0xff]
    %v1417 = vld [vmem:[#allocation3 + $0x70] sm:$0xff]
    %v1418 = vld [vmem:[#allocation3 + $0x78] sm:$0xff]
    %v1420 = vsel %vm457, %v1415, 0
    %v1423 = vsel %vm457, %v1416, 0
    %v1426 = vsel %vm457, %v1413, 0
    %v1429 = vsel %vm457, %v1414, 0
    %1431 = vmatprep.subr.mxu0 0.0
    %1432 = vmatpush1.xpose.msra.mxu0 %v1426
    %1433 = vmatprep.subr.mxu0 0.0
    %1434 = vmatpush1.xpose.msra.mxu0 %v1429
    %1435 = vmatprep.subr.mxu0 0.0
    %1436 = vmatpush1.xpose.msra.mxu0 0.0
    %1437 = vmatprep.subr.mxu0 0.0
    %1438 = vmatpush1.xpose.msra.mxu0 0.0
    %1439 = vmatprep.subr.mxu0 0.0
    %1440 = vmatpush1.xpose.msra.mxu0 0.0
    %1441 = vmatprep.subr.mxu0 0.0
    %1442 = vmatpush1.xpose.msra.mxu0 0.0
    %1443 = vmatprep.subr.mxu0 0.0
    %1444 = vmatpush1.xpose.msra.mxu0 0.0
    %1445 = vmatprep.subr.mxu0 0.0
    %1446 = vmatpush1.xpose.msra.mxu0 0.0
    %1447 = vmatprep.subr.mxu0 0.0
    %1448 = vmatpush1.xpose.msra.mxu0 0.0
    %1449 = vmatprep.subr.mxu0 0.0
    %1450 = vmatpush1.xpose.msra.mxu0 0.0
    %1451 = vmatprep.subr.mxu0 0.0
    %1452 = vmatpush1.xpose.msra.mxu0 0.0
    %1453 = vmatprep.subr.mxu0 0.0
    %1454 = vmatpush1.xpose.msra.mxu0 0.0
    %1455 = vmatprep.subr.mxu0 0.0
    %1456 = vmatpush1.xpose.msra.mxu0 0.0
    %1457 = vmatprep.subr.mxu0 0.0
    %1458 = vmatpush1.xpose.msra.mxu0 0.0
    %1459 = vmatprep.subr.mxu0 0.0
    %1460 = vmatpush1.xpose.msra.mxu0 0.0
    %1461 = vmatprep.subr.mxu0 0.0
    %1462 = vmatpush1.xpose.msra.mxu0 0.0
    %1463 = vmatprep.subr.mxu0 0.0
    %1464 = vmatpush1.xpose.msra.mxu0 0.0
    %1465 = vmatprep.subr.mxu0 0.0
    %1466 = vmatpush1.xpose.msra.mxu0 0.0
    %1467 = vmatprep.subr.mxu0 0.0
    %1468 = vmatpush1.xpose.msra.mxu0 0.0
    %1469 = vmatprep.subr.mxu0 0.0
    %1470 = vmatpush1.xpose.msra.mxu0 0.0
    %1471 = vmatprep.subr.mxu0 0.0
    %1472 = vmatpush1.xpose.msra.mxu0 0.0
    %1473 = vmatprep.subr.mxu0 0.0
    %1474 = vmatpush1.xpose.msra.mxu0 0.0
    %1475 = vmatprep.subr.mxu0 0.0
    %1476 = vmatpush1.xpose.msra.mxu0 0.0
    %1477 = vmatprep.subr.mxu0 0.0
    %1478 = vmatpush1.xpose.msra.mxu0 0.0
    %1479 = vmatprep.subr.mxu0 0.0
    %1480 = vmatpush1.xpose.msra.mxu0 0.0
    %1481 = vmatprep.subr.mxu0 0.0
    %1482 = vmatpush1.xpose.msra.mxu0 0.0
    %1483 = vmatprep.subr.mxu0 0.0
    %1484 = vmatpush1.xpose.msra.mxu0 0.0
    %1485 = vmatprep.subr.mxu0 0.0
    %1486 = vmatpush1.xpose.msra.mxu0 0.0
    %1487 = vmatprep.subr.mxu0 0.0
    %1488 = vmatpush1.xpose.msra.mxu0 0.0
    %1489 = vmatprep.subr.mxu0 0.0
    %1490 = vmatpush1.xpose.msra.mxu0 0.0
    %1491 = vmatprep.subr.mxu0 0.0
    %1492 = vmatpush1.xpose.msra.mxu0 0.0
    %1493 = vmatprep.subr.mxu0 0.0
    %1494 = vmatpush1.xpose.msra.mxu0 0.0
    %1495 = vmatprep.mubr.f32.mxu0 0.0
    %1496 = vmatmul.mubr.f32.gmra.mrb[0].mxu0 %v1420
    %v1497 = vpop.f32.mrb[0].mxu0
    %v1498 = vadd.f32 0.0, %v1497
    %v1499 = vpop.f32.mrb[0].mxu0
    %1500 = vmatprep.mubr.f32.mxu0 0.0
    %1501 = vmatmul.mubr.f32.gmra.mrb[0].mxu0 %v1423
    %v1502 = vpop.f32.mrb[0].mxu0
    %v1503 = vadd.f32 0.0, %v1502
    %v1504 = vpop.f32.mrb[0].mxu0
    %1505 = vdwg.mxu0
    %v1506 = vmul.f32 %v1498, 0.0625
    %v1507 = vmul.f32 %v1503, 0.0625
    %v1508 = vsel %vm457, %v1506, -inf
    %1509 = vmax.xlane.f32.xlu0 %v1508
    %v1510 = vpop.xlane.xlu0 %1509
    %v1511 = vsel %vm457, %v1507, -inf
    %1512 = vmax.xlane.f32.xlu0 %v1511
    %v1513 = vpop.xlane.xlu0 %1512
    %v1514 = vsub.f32 %v1506, %v1510
    %v1515 = vsub.f32 %v1507, %v1513
    %v1516 = vmul.f32 %v1514, 1.442695
    %v1517 = vpow.pop %v1516
    %v1518 = vmul.f32 %v1515, 1.442695
    %v1519 = vpow.pop %v1518
    %v1520 = vsel %vm457, %v1517, 0.0
    %1521 = vadd.xlane.f32.xlu0 %v1520
    %v1522 = vpop.xlane.xlu0 %1521
    %v1523 = vsel %vm457, %v1519, 0.0
    %1524 = vadd.xlane.f32.xlu0 %v1523
    %v1525 = vpop.xlane.xlu0 %1524
    %v1526 = vrcp.pop %v1522
    %v1527 = vrcp.pop %v1525
    %v1528 = vmul.f32 %v1517, %v1526
    %v1529 = vmul.f32 %v1519, %v1527
    %v1531 = vsel %vm457, %v1528, 0
    %v1534 = vsel %vm457, %v1529, 0
    %1536 = vmatprep.subr.mxu0 0.0
    %1537 = vmatpush1.msra.mxu0 %v1417
    %1538 = vmatprep.subr.mxu0 0.0
    %1539 = vmatpush1.msra.mxu0 %v1418
    %1540 = vmatprep.subr.mxu0 0.0
    %1541 = vmatpush1.msra.mxu0 0.0
    %1542 = vmatprep.subr.mxu0 0.0
    %1543 = vmatpush1.msra.mxu0 0.0
    %1544 = vmatprep.subr.mxu0 0.0
    %1545 = vmatpush1.msra.mxu0 0.0
    %1546 = vmatprep.subr.mxu0 0.0
    %1547 = vmatpush1.msra.mxu0 0.0
    %1548 = vmatprep.subr.mxu0 0.0
    %1549 = vmatpush1.msra.mxu0 0.0
    %1550 = vmatprep.subr.mxu0 0.0
    %1551 = vmatpush1.msra.mxu0 0.0
    %1552 = vmatprep.subr.mxu0 0.0
    %1553 = vmatpush1.msra.mxu0 0.0
    %1554 = vmatprep.subr.mxu0 0.0
    %1555 = vmatpush1.msra.mxu0 0.0
    %1556 = vmatprep.subr.mxu0 0.0
    %1557 = vmatpush1.msra.mxu0 0.0
    %1558 = vmatprep.subr.mxu0 0.0
    %1559 = vmatpush1.msra.mxu0 0.0
    %1560 = vmatprep.subr.mxu0 0.0
    %1561 = vmatpush1.msra.mxu0 0.0
    %1562 = vmatprep.subr.mxu0 0.0
    %1563 = vmatpush1.msra.mxu0 0.0
    %1564 = vmatprep.subr.mxu0 0.0
    %1565 = vmatpush1.msra.mxu0 0.0
    %1566 = vmatprep.subr.mxu0 0.0
    %1567 = vmatpush1.msra.mxu0 0.0
    %1568 = vmatprep.subr.mxu0 0.0
    %1569 = vmatpush1.msra.mxu0 0.0
    %1570 = vmatprep.subr.mxu0 0.0
    %1571 = vmatpush1.msra.mxu0 0.0
    %1572 = vmatprep.subr.mxu0 0.0
    %1573 = vmatpush1.msra.mxu0 0.0
    %1574 = vmatprep.subr.mxu0 0.0
    %1575 = vmatpush1.msra.mxu0 0.0
    %1576 = vmatprep.subr.mxu0 0.0
    %1577 = vmatpush1.msra.mxu0 0.0
    %1578 = vmatprep.subr.mxu0 0.0
    %1579 = vmatpush1.msra.mxu0 0.0
    %1580 = vmatprep.subr.mxu0 0.0
    %1581 = vmatpush1.msra.mxu0 0.0
    %1582 = vmatprep.subr.mxu0 0.0
    %1583 = vmatpush1.msra.mxu0 0.0
    %1584 = vmatprep.subr.mxu0 0.0
    %1585 = vmatpush1.msra.mxu0 0.0
    %1586 = vmatprep.subr.mxu0 0.0
    %1587 = vmatpush1.msra.mxu0 0.0
    %1588 = vmatprep.subr.mxu0 0.0
    %1589 = vmatpush1.msra.mxu0 0.0
    %1590 = vmatprep.subr.mxu0 0.0
    %1591 = vmatpush1.msra.mxu0 0.0
    %1592 = vmatprep.subr.mxu0 0.0
    %1593 = vmatpush1.msra.mxu0 0.0
    %1594 = vmatprep.subr.mxu0 0.0
    %1595 = vmatpush1.msra.mxu0 0.0
    %1596 = vmatprep.subr.mxu0 0.0
    %1597 = vmatpush1.msra.mxu0 0.0
    %1598 = vmatprep.subr.mxu0 0.0
    %1599 = vmatpush1.msra.mxu0 0.0
    %1600 = vmatprep.mubr.f32.mxu0 0.0
    %1601 = vmatmul.mubr.f32.gmra.mrb[0].mxu0 %v1531
    %v1602 = vpop.f32.mrb[0].mxu0
    %v1603 = vadd.f32 0.0, %v1602
    %v1604 = vpop.f32.mrb[0].mxu0
    %1605 = vmatprep.mubr.f32.mxu0 0.0
    %1606 = vmatmul.mubr.f32.gmra.mrb[0].mxu0 %v1534
    %v1607 = vpop.f32.mrb[0].mxu0
    %v1608 = vadd.f32 0.0, %v1607
    %v1609 = vpop.f32.mrb[0].mxu0
    %1610 = vdwg.mxu0
    %1613 = vrot.lane.b32.xlu0 %v1603, 48
    %v1614 = vpop.permute.xlu0 %1613
    %1615 = vrot.lane.b32.xlu0 %v1608, 48
    %v1616 = vpop.permute.xlu0 %1615
    %vm1619 = vcmask 523648
    %1620 = vst.msk [vmem:[#allocation5] sm:$0xff] %vm1619, %v1614
    %1621 = vst.msk [vmem:[#allocation5 + $0x8] sm:$0xff] %vm1619, %v1616
    %v1622 = vld [vmem:[#allocation5] sm:$0xff]
    %v1623 = vld [vmem:[#allocation5 + $0x8] sm:$0xff]
    %v1624 = vld [vmem:[%s5] sm:$0xff]
    %v1625 = vld [vmem:[%s5 + $0x8] sm:$0xff]
    %v1626 = vld [vmem:[%s5 + $0x10] sm:$0xff]
    %v1627 = vld [vmem:[%s5 + $0x18] sm:$0xff]
    %v1628 = vld [vmem:[%s5 + $0x20] sm:$0xff]
    %v1629 = vld [vmem:[%s5 + $0x28] sm:$0xff]
    %v1630 = vld [vmem:[%s5 + $0x30] sm:$0xff]
    %v1631 = vld [vmem:[%s5 + $0x38] sm:$0xff]
    %v1632 = vld [vmem:[%s6] sm:$0x1]
    %v1634 = vlaneseq
    %v1635 = vshrl.u32 %v1634, 7
    %v1636 = vsub.s32 0, %v1635
    %v1637 = vrot.slane %v1632, %v1636
    %v1640 = vsel %vm44, %v1622, 0
    %v1643 = vsel %vm44, %v1623, 0
    %v1646 = vsel %vm44, %v1624, 0
    %v1649 = vsel %vm44, %v1625, 0
    %v1652 = vsel %vm44, %v1626, 0
    %v1655 = vsel %vm44, %v1627, 0
    %v1658 = vsel %vm44, %v1628, 0
    %v1661 = vsel %vm44, %v1629, 0
    %v1664 = vsel %vm44, %v1630, 0
    %v1667 = vsel %vm44, %v1631, 0
    %1669 = vmatprep.subr.mxu0 0.0
    %1670 = vmatpush1.xpose.msra.mxu0 %v1646
    %1671 = vmatprep.subr.mxu0 0.0
    %1672 = vmatpush1.xpose.msra.mxu0 %v1649
    %1673 = vmatprep.subr.mxu0 0.0
    %1674 = vmatpush1.xpose.msra.mxu0 %v1652
    %1675 = vmatprep.subr.mxu0 0.0
    %1676 = vmatpush1.xpose.msra.mxu0 %v1655
    %1677 = vmatprep.subr.mxu0 0.0
    %1678 = vmatpush1.xpose.msra.mxu0 %v1658
    %1679 = vmatprep.subr.mxu0 0.0
    %1680 = vmatpush1.xpose.msra.mxu0 %v1661
    %1681 = vmatprep.subr.mxu0 0.0
    %1682 = vmatpush1.xpose.msra.mxu0 %v1664
    %1683 = vmatprep.subr.mxu0 0.0
    %1684 = vmatpush1.xpose.msra.mxu0 %v1667
    %1685 = vmatprep.subr.mxu0 0.0
    %1686 = vmatpush1.xpose.msra.mxu0 0.0
    %1687 = vmatprep.subr.mxu0 0.0
    %1688 = vmatpush1.xpose.msra.mxu0 0.0
    %1689 = vmatprep.subr.mxu0 0.0
    %1690 = vmatpush1.xpose.msra.mxu0 0.0
    %1691 = vmatprep.subr.mxu0 0.0
    %1692 = vmatpush1.xpose.msra.mxu0 0.0
    %1693 = vmatprep.subr.mxu0 0.0
    %1694 = vmatpush1.xpose.msra.mxu0 0.0
    %1695 = vmatprep.subr.mxu0 0.0
    %1696 = vmatpush1.xpose.msra.mxu0 0.0
    %1697 = vmatprep.subr.mxu0 0.0
    %1698 = vmatpush1.xpose.msra.mxu0 0.0
    %1699 = vmatprep.subr.mxu0 0.0
    %1700 = vmatpush1.xpose.msra.mxu0 0.0
    %1701 = vmatprep.subr.mxu0 0.0
    %1702 = vmatpush1.xpose.msra.mxu0 0.0
    %1703 = vmatprep.subr.mxu0 0.0
    %1704 = vmatpush1.xpose.msra.mxu0 0.0
    %1705 = vmatprep.subr.mxu0 0.0
    %1706 = vmatpush1.xpose.msra.mxu0 0.0
    %1707 = vmatprep.subr.mxu0 0.0
    %1708 = vmatpush1.xpose.msra.mxu0 0.0
    %1709 = vmatprep.subr.mxu0 0.0
    %1710 = vmatpush1.xpose.msra.mxu0 0.0
    %1711 = vmatprep.subr.mxu0 0.0
    %1712 = vmatpush1.xpose.msra.mxu0 0.0
    %1713 = vmatprep.subr.mxu0 0.0
    %1714 = vmatpush1.xpose.msra.mxu0 0.0
    %1715 = vmatprep.subr.mxu0 0.0
    %1716 = vmatpush1.xpose.msra.mxu0 0.0
    %1717 = vmatprep.subr.mxu0 0.0
    %1718 = vmatpush1.xpose.msra.mxu0 0.0
    %1719 = vmatprep.subr.mxu0 0.0
    %1720 = vmatpush1.xpose.msra.mxu0 0.0
    %1721 = vmatprep.subr.mxu0 0.0
    %1722 = vmatpush1.xpose.msra.mxu0 0.0
    %1723 = vmatprep.subr.mxu0 0.0
    %1724 = vmatpush1.xpose.msra.mxu0 0.0
    %1725 = vmatprep.subr.mxu0 0.0
    %1726 = vmatpush1.xpose.msra.mxu0 0.0
    %1727 = vmatprep.subr.mxu0 0.0
    %1728 = vmatpush1.xpose.msra.mxu0 0.0
    %1729 = vmatprep.subr.mxu0 0.0
    %1730 = vmatpush1.xpose.msra.mxu0 0.0
    %1731 = vmatprep.subr.mxu0 0.0
    %1732 = vmatpush1.xpose.msra.mxu0 0.0
    %1733 = vmatprep.mubr.f32.mxu0 0.0
    %1734 = vmatmul.mubr.f32.gmra.mrb[0].mxu0 %v1640
    %v1735 = vpop.f32.mrb[0].mxu0
    %v1736 = vadd.f32 %v1637, %v1735
    %v1737 = vpop.f32.mrb[0].mxu0
    %1738 = vmatprep.mubr.f32.mxu0 0.0
    %1739 = vmatmul.mubr.f32.gmra.mrb[0].mxu0 %v1643
    %v1740 = vpop.f32.mrb[0].mxu0
    %v1741 = vadd.f32 %v1637, %v1740
    %v1742 = vpop.f32.mrb[0].mxu0
    %1743 = vdwg.mxu0
    %1744 = vst.msk [vmem:[#allocation6] sm:$0xff] %vm44, %v1736
    %1745 = vst.msk [vmem:[#allocation6 + $0x8] sm:$0xff] %vm44, %v1741
    // Predicated region
    $region30: #{mha_forward.1} parent=1 // pred_check
      _
    $region31: #{mha_forward.1} parent=1 // pred_check_branch
      %1747 = sbr.rel (0) target = $region33
    $region32: #{mha_forward.1} parent=1 // pred_region
      %s1749 = ssub.s32 256, 256
      %1750 = vsyncadd [#allocation7], %s1749
      %s1751 = sshll.u32 [#allocation6], 4
      %s1752 = int_to_ptr.vmem [resolvable:$true] %s1751
      %1757 = dma.vmem_to_hbm [thread:$0]  %s1752, 256, %s7, [#allocation7], 128, 128, 8
    $region33: #{mha_forward.1} parent=1 // pred_fallthru
      _
    // Predicated region
    $region34: #{mha_forward.1} parent=1 // pred_check
      _
    $region35: #{mha_forward.1} parent=1 // pred_check_branch
      %1759 = sbr.rel (0) target = $region37
    $region36: #{mha_forward.1} parent=1 // pred_region
      %1760 = dma.done [#allocation7], 256
    $region37: #{mha_forward.1} parent=1 // pred_fallthru
      _
    %1761 = vsyncpa [#allocation7], 1

</llo_original>
